<compile_context>
chip_gen: v6e
topology: v6e:2x2x1
jax: 0.10.0
libtpu: 0.0.40
codegen_flags: <defaults>
</compile_context>

<pallas_src>
import jax
import jax.numpy as jnp
from jax.experimental import pallas as pl
from jax.experimental.pallas import tpu as pltpu


def _round_up(x, m):
    return (x + m - 1) // m * m


def _pick_time_block(seq_len, cap=16):
    for cand in range(min(cap, seq_len), 0, -1):
        if seq_len % cand == 0:
            return cand
    return 1


def _pick_batch_block(batch_p, cap=256):
    best = 8
    d = 8
    while d <= min(batch_p, cap):
        if batch_p % d == 0:
            best = d
        d += 8
    return best


def lstm_recurrence_kernel(gx_ref, whh_hbm_ref,
                           hseq_ref, cfin_ref,
                           whh_vmem, h_scr, c_scr, dma_sem):
    """One (batch_block, time_block) grid step of the LSTM recurrence.

    gx_ref      : (T_BLK, B_BLK, 4*H_pad) precomputed x @ W_ih^T + bias, f32
    whh_hbm_ref : (H_pad, 4*H_pad) recurrent weights, left in HBM (pl.ANY)
    hseq_ref    : (T_BLK, B_BLK, H_pad) hidden-state output block
    cfin_ref    : (B_BLK, H_pad) final cell state (written only on last time block)
    whh_vmem    : single-buffered VMEM copy of W_hh^T (loaded once per batch block)
    h_scr/c_scr : f32 recurrent state, persists across time blocks
    """
    t_blk = pl.program_id(1)
    n_t_blk = pl.num_programs(1)
    t_steps = gx_ref.shape[0]
    hidden_p = h_scr.shape[-1]

    @pl.when(t_blk == 0)
    def _init():
        # One weight DMA per batch block (single-buffered), not two buffers per step.
        cp = pltpu.make_async_copy(whh_hbm_ref, whh_vmem, dma_sem)
        cp.start()
        cp.wait()
        h_scr[...] = jnp.zeros_like(h_scr)
        c_scr[...] = jnp.zeros_like(c_scr)

    def step(tt, carry):
        # gates = (x_t @ W_ih^T + b_ih + b_hh) + h_{t-1} @ W_hh^T   (f32 accumulation)
        gates = gx_ref[tt] + jnp.dot(
            h_scr[...].astype(whh_vmem.dtype), whh_vmem[...],
            preferred_element_type=jnp.float32)
        # Gate order [i, f, g, o]; each slice is a multiple of 128 wide (lane aligned).
        i_g = jax.nn.sigmoid(gates[:, 0 * hidden_p:1 * hidden_p])
        f_g = jax.nn.sigmoid(gates[:, 1 * hidden_p:2 * hidden_p])
        g_g = jnp.tanh(gates[:, 2 * hidden_p:3 * hidden_p])
        o_g = jax.nn.sigmoid(gates[:, 3 * hidden_p:4 * hidden_p])
        c_new = f_g * c_scr[...] + i_g * g_g
        h_new = o_g * jnp.tanh(c_new)
        c_scr[...] = c_new
        h_scr[...] = h_new
        hseq_ref[tt] = h_new.astype(hseq_ref.dtype)
        return carry

    jax.lax.fori_loop(0, t_steps, step, 0, unroll=True)

    @pl.when(t_blk == n_t_blk - 1)
    def _final():
        cfin_ref[...] = c_scr[...].astype(cfin_ref.dtype)


def lstm_forward(x, w_ih, w_hh, b_ih, b_hh, *, param_dtype=jnp.float32,
                 time_block=None):
    """x: (seq_len, batch, input_size). Returns (h_seq, (h, c)) like nn.LSTM."""
    seq_len, batch, input_size = x.shape
    hidden = w_hh.shape[1]

    hidden_p = _round_up(hidden, 128)   # lane-align each gate slice
    batch_p = _round_up(batch, 8)       # sublane-align batch rows

    t_blk = time_block or _pick_time_block(seq_len)
    assert seq_len % t_blk == 0, "time_block must divide seq_len"
    b_blk = _pick_batch_block(batch_p)
    n_b = batch_p // b_blk
    n_t = seq_len // t_blk

    # ---- Input projection hoisted out of the recurrence: one big matmul over all steps.
    bias = (b_ih + b_hh).astype(jnp.float32)
    gx = jnp.dot(x.reshape(seq_len * batch, input_size).astype(jnp.float32),
                 jnp.transpose(w_ih).astype(jnp.float32),
                 preferred_element_type=jnp.float32) + bias
    gx = gx.reshape(seq_len, batch, 4, hidden)
    gx = jnp.pad(gx, ((0, 0), (0, batch_p - batch), (0, 0), (0, hidden_p - hidden)))
    gx = gx.reshape(seq_len, batch_p, 4 * hidden_p)

    # ---- Recurrent weights: per-gate padded transpose so gate slices stay aligned.
    whh = w_hh.reshape(4, hidden, hidden)          # (gate, out, in)
    whh = jnp.transpose(whh, (2, 0, 1))            # (in, gate, out)
    whh = jnp.pad(whh, ((0, hidden_p - hidden), (0, 0), (0, hidden_p - hidden)))
    whh_t = whh.reshape(hidden_p, 4 * hidden_p).astype(param_dtype)

    out_dtype = x.dtype
    out_shapes = (
        jax.ShapeDtypeStruct((seq_len, batch_p, hidden_p), out_dtype),  # h_seq (padded)
        jax.ShapeDtypeStruct((batch_p, hidden_p), jnp.float32),         # final c (padded)
    )

    grid_spec = pltpu.PrefetchScalarGridSpec(
        num_scalar_prefetch=0,
        grid=(n_b, n_t),
        in_specs=[
            pl.BlockSpec((t_blk, b_blk, 4 * hidden_p), lambda b, t: (t, b, 0)),
            pl.BlockSpec(memory_space=pl.ANY),   # W_hh^T stays in HBM; DMA'd once
        ],
        out_specs=[
            pl.BlockSpec((t_blk, b_blk, hidden_p), lambda b, t: (t, b, 0)),
            pl.BlockSpec((b_blk, hidden_p), lambda b, t: (b, 0)),
        ],
        scratch_shapes=[
            pltpu.VMEM((hidden_p, 4 * hidden_p), param_dtype),  # single-buffered W_hh^T
            pltpu.VMEM((b_blk, hidden_p), jnp.float32),         # h state
            pltpu.VMEM((b_blk, hidden_p), jnp.float32),         # c state
            pltpu.SemaphoreType.DMA,
        ],
    )

    h_seq_p, c_fin_p = pl.pallas_call(
        lstm_recurrence_kernel,
        out_shape=out_shapes,
        grid_spec=grid_spec,
        compiler_params=pltpu.CompilerParams(
            # batch blocks are independent (megacore-shardable on v7x); time is a
            # sequential recurrence.
            dimension_semantics=("parallel", "arbitrary")),
    )(gx, whh_t)

    h_seq = h_seq_p[:, :batch, :hidden]
    h_fin = h_seq[seq_len - 1:seq_len]                                # (1, B, H)
    c_fin = c_fin_p[:batch, :hidden].astype(out_dtype)[None]          # (1, B, H)
    return h_seq, (h_fin, c_fin)


def lstm_reference(x, w_ih, w_hh, b_ih, b_hh):
    """Pure-JAX reference with PyTorch nn.LSTM semantics (single layer)."""
    seq_len, batch, _ = x.shape
    hidden = w_hh.shape[1]
    h = jnp.zeros((batch, hidden), jnp.float32)
    c = jnp.zeros((batch, hidden), jnp.float32)
    hs = []
    for t in range(seq_len):
        gates = x[t] @ w_ih.T + b_ih + h @ w_hh.T + b_hh
        i = jax.nn.sigmoid(gates[:, 0 * hidden:1 * hidden])
        f = jax.nn.sigmoid(gates[:, 1 * hidden:2 * hidden])
        g = jnp.tanh(gates[:, 2 * hidden:3 * hidden])
        o = jax.nn.sigmoid(gates[:, 3 * hidden:4 * hidden])
        c = f * c + i * g
        h = o * jnp.tanh(c)
        hs.append(h)
    h_seq = jnp.stack(hs, axis=0)
    return h_seq, (h[None], c[None])


if __name__ == "__main__":
    seq_len, batch, input_size, hidden = 8, 2, 4, 20

    key = jax.random.PRNGKey(0)
    kx, k1, k2, k3, k4 = jax.random.split(key, 5)
    bound = 1.0 / jnp.sqrt(hidden)

    x = jax.random.normal(kx, (seq_len, batch, input_size), jnp.float32)
    w_ih = jax.random.uniform(k1, (4 * hidden, input_size), jnp.float32, -bound, bound)
    w_hh = jax.random.uniform(k2, (4 * hidden, hidden), jnp.float32, -bound, bound)
    b_ih = jax.random.uniform(k3, (4 * hidden,), jnp.float32, -bound, bound)
    b_hh = jax.random.uniform(k4, (4 * hidden,), jnp.float32, -bound, bound)

    h_seq_ref, (h_ref, c_ref) = lstm_reference(x, w_ih, w_hh, b_ih, b_hh)

    # f32 weights: exact-semantics path.
    h_seq, (h_fin, c_fin) = lstm_forward(x, w_ih, w_hh, b_ih, b_hh)
    jax.block_until_ready((h_seq, h_fin, c_fin))
    assert jnp.allclose(h_seq, h_seq_ref, atol=1e-4), "h_seq mismatch"
    assert jnp.allclose(h_fin, h_ref, atol=1e-4), "h final mismatch"
    assert jnp.allclose(c_fin, c_ref, atol=1e-4), "c final mismatch"

    # bf16 recurrent-weight path (v6e/v7x MXU-friendly, f32 accumulation) — looser tol.
    h_seq_b, (h_fin_b, c_fin_b) = lstm_forward(x, w_ih, w_hh, b_ih, b_hh,
                                               param_dtype=jnp.bfloat16)
    jax.block_until_ready((h_seq_b, h_fin_b, c_fin_b))
    assert jnp.allclose(h_seq_b, h_seq_ref, atol=5e-2), "bf16 h_seq mismatch"
    assert jnp.allclose(c_fin_b, c_ref, atol=5e-2), "bf16 c final mismatch"

    print("KERNEL_OK")
</pallas_src>

<mosaic_0001>
module attributes {stable_mosaic.version = 11 : i64} {
  func.func @lstm_recurrence_kernel(%arg0: i32, %arg1: i32, %arg2: memref<8x8x512xf32, #tpu.memory_space<vmem>>, %arg3: memref<128x512xf32, #tpu.memory_space<any>>, %arg4: memref<8x8x128xf32, #tpu.memory_space<vmem>>, %arg5: memref<8x128xf32, #tpu.memory_space<vmem>>, %arg6: memref<128x512xf32, #tpu.memory_space<vmem>>, %arg7: memref<8x128xf32, #tpu.memory_space<vmem>>, %arg8: memref<8x128xf32, #tpu.memory_space<vmem>>, %arg9: memref<!tpu.dma_semaphore, #tpu.memory_space<semaphore_mem>>) attributes {dimension_semantics = [#tpu.dimension_semantics<parallel>, #tpu.dimension_semantics<arbitrary>], iteration_bounds = array<i64: 1, 1>, scalar_prefetch = 0 : i64, scratch_operands = 4 : i64, tpu.core_type = #tpu.core_type<tc>, window_params = [{transform_indices = @transform_0, window_bounds = array<i64: 8, 8, 512>}, {}, {transform_indices = @transform_2, window_bounds = array<i64: 8, 8, 128>}, {transform_indices = @transform_3, window_bounds = array<i64: 8, 128>}]} {
    %c0_i32 = arith.constant 0 : i32
    %0 = arith.cmpi eq, %arg1, %c0_i32 : i32
    %1 = arith.extui %0 : i1 to i32
    %c0_i32_0 = arith.constant 0 : i32
    %2 = arith.cmpi ne, %1, %c0_i32_0 : i32
    scf.if %2 {
      tpu.enqueue_dma source(%arg3 : memref<128x512xf32, #tpu.memory_space<any>>) target(%arg6 : memref<128x512xf32, #tpu.memory_space<vmem>>) target_semaphore(%arg9 : memref<!tpu.dma_semaphore, #tpu.memory_space<semaphore_mem>>)
      tpu.wait_dma2 semaphore(%arg9 : memref<!tpu.dma_semaphore, #tpu.memory_space<semaphore_mem>>) src(%arg3 : memref<128x512xf32, #tpu.memory_space<any>>) dst(%arg6 : memref<128x512xf32, #tpu.memory_space<vmem>>)
      %cst_146 = arith.constant 0.000000e+00 : f32
      %318 = vector.broadcast %cst_146 : f32 to vector<8x128xf32>
      %c0_147 = arith.constant 0 : index
      %c0_148 = arith.constant 0 : index
      %319 = vector.load %arg7[%c0_147, %c0_148] : memref<8x128xf32, #tpu.memory_space<vmem>>, vector<8x128xf32>
      tpu.vector_store %arg7[%c0_147, %c0_148], %318 {strides = array<i32>} : memref<8x128xf32, #tpu.memory_space<vmem>>, vector<8x128xf32>,
      %cst_149 = arith.constant 0.000000e+00 : f32
      %320 = vector.broadcast %cst_149 : f32 to vector<8x128xf32>
      %c0_150 = arith.constant 0 : index
      %c0_151 = arith.constant 0 : index
      %321 = vector.load %arg8[%c0_150, %c0_151] : memref<8x128xf32, #tpu.memory_space<vmem>>, vector<8x128xf32>
      tpu.vector_store %arg8[%c0_150, %c0_151], %320 {strides = array<i32>} : memref<8x128xf32, #tpu.memory_space<vmem>>, vector<8x128xf32>,
    } else {
    }
    %c0_i32_1 = arith.constant 0 : i32
    %3 = arith.index_cast %c0_i32_1 : i32 to index
    %c0 = arith.constant 0 : index
    %c0_2 = arith.constant 0 : index
    %4 = vector.load %arg2[%3, %c0, %c0_2] : memref<8x8x512xf32, #tpu.memory_space<vmem>>, vector<1x8x512xf32>
    %5 = vector.shape_cast %4 : vector<1x8x512xf32> to vector<8x512xf32>
    %c0_3 = arith.constant 0 : index
    %c0_4 = arith.constant 0 : index
    %6 = vector.load %arg7[%c0_3, %c0_4] : memref<8x128xf32, #tpu.memory_space<vmem>>, vector<8x128xf32>
    %c0_5 = arith.constant 0 : index
    %c0_6 = arith.constant 0 : index
    %7 = vector.load %arg6[%c0_5, %c0_6] : memref<128x512xf32, #tpu.memory_space<vmem>>, vector<128x512xf32>
    %cst = arith.constant dense<0.000000e+00> : vector<8x512xf32>
    %8 = tpu.matmul %6, %7, %cst {dimension_numbers = #tpu.dot_dimension_numbers<[1], [0], [0], [1], [0, 0, 1, 1], [], []>} : vector<8x128xf32>, vector<128x512xf32>, vector<8x512xf32> -> vector<8x512xf32>
    %9 = arith.addf %5, %8 : vector<8x512xf32>
    %10 = vector.extract_strided_slice %9 {offsets = [0, 0], sizes = [8, 128], strides = [1, 1]} : vector<8x512xf32> to vector<8x128xf32>
    %11 = arith.negf %10 : vector<8x128xf32>
    %12 = math.exp %11 : vector<8x128xf32>
    %cst_7 = arith.constant 1.000000e+00 : f32
    %13 = vector.broadcast %cst_7 : f32 to vector<8x128xf32>
    %14 = arith.addf %13, %12 : vector<8x128xf32>
    %15 = arith.divf %13, %14 : vector<8x128xf32>
    %16 = vector.extract_strided_slice %9 {offsets = [0, 128], sizes = [8, 128], strides = [1, 1]} : vector<8x512xf32> to vector<8x128xf32>
    %17 = arith.negf %16 : vector<8x128xf32>
    %18 = math.exp %17 : vector<8x128xf32>
    %cst_8 = arith.constant 1.000000e+00 : f32
    %19 = vector.broadcast %cst_8 : f32 to vector<8x128xf32>
    %20 = arith.addf %19, %18 : vector<8x128xf32>
    %21 = arith.divf %19, %20 : vector<8x128xf32>
    %22 = vector.extract_strided_slice %9 {offsets = [0, 256], sizes = [8, 128], strides = [1, 1]} : vector<8x512xf32> to vector<8x128xf32>
    %23 = math.tanh %22 : vector<8x128xf32>
    %24 = vector.extract_strided_slice %9 {offsets = [0, 384], sizes = [8, 128], strides = [1, 1]} : vector<8x512xf32> to vector<8x128xf32>
    %25 = arith.negf %24 : vector<8x128xf32>
    %26 = math.exp %25 : vector<8x128xf32>
    %cst_9 = arith.constant 1.000000e+00 : f32
    %27 = vector.broadcast %cst_9 : f32 to vector<8x128xf32>
    %28 = arith.addf %27, %26 : vector<8x128xf32>
    %29 = arith.divf %27, %28 : vector<8x128xf32>
    %c0_10 = arith.constant 0 : index
    %c0_11 = arith.constant 0 : index
    %30 = vector.load %arg8[%c0_10, %c0_11] : memref<8x128xf32, #tpu.memory_space<vmem>>, vector<8x128xf32>
    %31 = arith.mulf %21, %30 : vector<8x128xf32>
    %32 = arith.mulf %15, %23 : vector<8x128xf32>
    %33 = arith.addf %31, %32 : vector<8x128xf32>
    %34 = math.tanh %33 : vector<8x128xf32>
    %35 = arith.mulf %29, %34 : vector<8x128xf32>
    %c0_12 = arith.constant 0 : index
    %c0_13 = arith.constant 0 : index
    %36 = vector.load %arg8[%c0_12, %c0_13] : memref<8x128xf32, #tpu.memory_space<vmem>>, vector<8x128xf32>
    tpu.vector_store %arg8[%c0_12, %c0_13], %33 {strides = array<i32>} : memref<8x128xf32, #tpu.memory_space<vmem>>, vector<8x128xf32>,
    %c0_14 = arith.constant 0 : index
    %c0_15 = arith.constant 0 : index
    %37 = vector.load %arg7[%c0_14, %c0_15] : memref<8x128xf32, #tpu.memory_space<vmem>>, vector<8x128xf32>
    tpu.vector_store %arg7[%c0_14, %c0_15], %35 {strides = array<i32>} : memref<8x128xf32, #tpu.memory_space<vmem>>, vector<8x128xf32>,
    %38 = arith.index_cast %c0_i32_1 : i32 to index
    %c0_16 = arith.constant 0 : index
    %c0_17 = arith.constant 0 : index
    %39 = vector.load %arg4[%38, %c0_16, %c0_17] : memref<8x8x128xf32, #tpu.memory_space<vmem>>, vector<1x8x128xf32>
    %40 = vector.shape_cast %39 : vector<1x8x128xf32> to vector<8x128xf32>
    %41 = vector.shape_cast %35 : vector<8x128xf32> to vector<1x8x128xf32>
    tpu.vector_store %arg4[%38, %c0_16, %c0_17], %41 {strides = array<i32>} : memref<8x8x128xf32, #tpu.memory_space<vmem>>, vector<1x8x128xf32>,
    %c1_i32 = arith.constant 1 : i32
    %42 = arith.index_cast %c1_i32 : i32 to index
    %c0_18 = arith.constant 0 : index
    %c0_19 = arith.constant 0 : index
    %43 = vector.load %arg2[%42, %c0_18, %c0_19] : memref<8x8x512xf32, #tpu.memory_space<vmem>>, vector<1x8x512xf32>
    %44 = vector.shape_cast %43 : vector<1x8x512xf32> to vector<8x512xf32>
    %c0_20 = arith.constant 0 : index
    %c0_21 = arith.constant 0 : index
    %45 = vector.load %arg7[%c0_20, %c0_21] : memref<8x128xf32, #tpu.memory_space<vmem>>, vector<8x128xf32>
    %c0_22 = arith.constant 0 : index
    %c0_23 = arith.constant 0 : index
    %46 = vector.load %arg6[%c0_22, %c0_23] : memref<128x512xf32, #tpu.memory_space<vmem>>, vector<128x512xf32>
    %cst_24 = arith.constant dense<0.000000e+00> : vector<8x512xf32>
    %47 = tpu.matmul %45, %46, %cst_24 {dimension_numbers = #tpu.dot_dimension_numbers<[1], [0], [0], [1], [0, 0, 1, 1], [], []>} : vector<8x128xf32>, vector<128x512xf32>, vector<8x512xf32> -> vector<8x512xf32>
    %48 = arith.addf %44, %47 : vector<8x512xf32>
    %49 = vector.extract_strided_slice %48 {offsets = [0, 0], sizes = [8, 128], strides = [1, 1]} : vector<8x512xf32> to vector<8x128xf32>
    %50 = arith.negf %49 : vector<8x128xf32>
    %51 = math.exp %50 : vector<8x128xf32>
    %cst_25 = arith.constant 1.000000e+00 : f32
    %52 = vector.broadcast %cst_25 : f32 to vector<8x128xf32>
    %53 = arith.addf %52, %51 : vector<8x128xf32>
    %54 = arith.divf %52, %53 : vector<8x128xf32>
    %55 = vector.extract_strided_slice %48 {offsets = [0, 128], sizes = [8, 128], strides = [1, 1]} : vector<8x512xf32> to vector<8x128xf32>
    %56 = arith.negf %55 : vector<8x128xf32>
    %57 = math.exp %56 : vector<8x128xf32>
    %cst_26 = arith.constant 1.000000e+00 : f32
    %58 = vector.broadcast %cst_26 : f32 to vector<8x128xf32>
    %59 = arith.addf %58, %57 : vector<8x128xf32>
    %60 = arith.divf %58, %59 : vector<8x128xf32>
    %61 = vector.extract_strided_slice %48 {offsets = [0, 256], sizes = [8, 128], strides = [1, 1]} : vector<8x512xf32> to vector<8x128xf32>
    %62 = math.tanh %61 : vector<8x128xf32>
    %63 = vector.extract_strided_slice %48 {offsets = [0, 384], sizes = [8, 128], strides = [1, 1]} : vector<8x512xf32> to vector<8x128xf32>
    %64 = arith.negf %63 : vector<8x128xf32>
    %65 = math.exp %64 : vector<8x128xf32>
    %cst_27 = arith.constant 1.000000e+00 : f32
    %66 = vector.broadcast %cst_27 : f32 to vector<8x128xf32>
    %67 = arith.addf %66, %65 : vector<8x128xf32>
    %68 = arith.divf %66, %67 : vector<8x128xf32>
    %c0_28 = arith.constant 0 : index
    %c0_29 = arith.constant 0 : index
    %69 = vector.load %arg8[%c0_28, %c0_29] : memref<8x128xf32, #tpu.memory_space<vmem>>, vector<8x128xf32>
    %70 = arith.mulf %60, %69 : vector<8x128xf32>
    %71 = arith.mulf %54, %62 : vector<8x128xf32>
    %72 = arith.addf %70, %71 : vector<8x128xf32>
    %73 = math.tanh %72 : vector<8x128xf32>
    %74 = arith.mulf %68, %73 : vector<8x128xf32>
    %c0_30 = arith.constant 0 : index
    %c0_31 = arith.constant 0 : index
    %75 = vector.load %arg8[%c0_30, %c0_31] : memref<8x128xf32, #tpu.memory_space<vmem>>, vector<8x128xf32>
    tpu.vector_store %arg8[%c0_30, %c0_31], %72 {strides = array<i32>} : memref<8x128xf32, #tpu.memory_space<vmem>>, vector<8x128xf32>,
    %c0_32 = arith.constant 0 : index
    %c0_33 = arith.constant 0 : index
    %76 = vector.load %arg7[%c0_32, %c0_33] : memref<8x128xf32, #tpu.memory_space<vmem>>, vector<8x128xf32>
    tpu.vector_store %arg7[%c0_32, %c0_33], %74 {strides = array<i32>} : memref<8x128xf32, #tpu.memory_space<vmem>>, vector<8x128xf32>,
    %77 = arith.index_cast %c1_i32 : i32 to index
    %c0_34 = arith.constant 0 : index
    %c0_35 = arith.constant 0 : index
    %78 = vector.load %arg4[%77, %c0_34, %c0_35] : memref<8x8x128xf32, #tpu.memory_space<vmem>>, vector<1x8x128xf32>
    %79 = vector.shape_cast %78 : vector<1x8x128xf32> to vector<8x128xf32>
    %80 = vector.shape_cast %74 : vector<8x128xf32> to vector<1x8x128xf32>
    tpu.vector_store %arg4[%77, %c0_34, %c0_35], %80 {strides = array<i32>} : memref<8x8x128xf32, #tpu.memory_space<vmem>>, vector<1x8x128xf32>,
    %c2_i32 = arith.constant 2 : i32
    %81 = arith.index_cast %c2_i32 : i32 to index
    %c0_36 = arith.constant 0 : index
    %c0_37 = arith.constant 0 : index
    %82 = vector.load %arg2[%81, %c0_36, %c0_37] : memref<8x8x512xf32, #tpu.memory_space<vmem>>, vector<1x8x512xf32>
    %83 = vector.shape_cast %82 : vector<1x8x512xf32> to vector<8x512xf32>
    %c0_38 = arith.constant 0 : index
    %c0_39 = arith.constant 0 : index
    %84 = vector.load %arg7[%c0_38, %c0_39] : memref<8x128xf32, #tpu.memory_space<vmem>>, vector<8x128xf32>
    %c0_40 = arith.constant 0 : index
    %c0_41 = arith.constant 0 : index
    %85 = vector.load %arg6[%c0_40, %c0_41] : memref<128x512xf32, #tpu.memory_space<vmem>>, vector<128x512xf32>
    %cst_42 = arith.constant dense<0.000000e+00> : vector<8x512xf32>
    %86 = tpu.matmul %84, %85, %cst_42 {dimension_numbers = #tpu.dot_dimension_numbers<[1], [0], [0], [1], [0, 0, 1, 1], [], []>} : vector<8x128xf32>, vector<128x512xf32>, vector<8x512xf32> -> vector<8x512xf32>
    %87 = arith.addf %83, %86 : vector<8x512xf32>
    %88 = vector.extract_strided_slice %87 {offsets = [0, 0], sizes = [8, 128], strides = [1, 1]} : vector<8x512xf32> to vector<8x128xf32>
    %89 = arith.negf %88 : vector<8x128xf32>
    %90 = math.exp %89 : vector<8x128xf32>
    %cst_43 = arith.constant 1.000000e+00 : f32
    %91 = vector.broadcast %cst_43 : f32 to vector<8x128xf32>
    %92 = arith.addf %91, %90 : vector<8x128xf32>
    %93 = arith.divf %91, %92 : vector<8x128xf32>
    %94 = vector.extract_strided_slice %87 {offsets = [0, 128], sizes = [8, 128], strides = [1, 1]} : vector<8x512xf32> to vector<8x128xf32>
    %95 = arith.negf %94 : vector<8x128xf32>
    %96 = math.exp %95 : vector<8x128xf32>
    %cst_44 = arith.constant 1.000000e+00 : f32
    %97 = vector.broadcast %cst_44 : f32 to vector<8x128xf32>
    %98 = arith.addf %97, %96 : vector<8x128xf32>
    %99 = arith.divf %97, %98 : vector<8x128xf32>
    %100 = vector.extract_strided_slice %87 {offsets = [0, 256], sizes = [8, 128], strides = [1, 1]} : vector<8x512xf32> to vector<8x128xf32>
    %101 = math.tanh %100 : vector<8x128xf32>
    %102 = vector.extract_strided_slice %87 {offsets = [0, 384], sizes = [8, 128], strides = [1, 1]} : vector<8x512xf32> to vector<8x128xf32>
    %103 = arith.negf %102 : vector<8x128xf32>
    %104 = math.exp %103 : vector<8x128xf32>
    %cst_45 = arith.constant 1.000000e+00 : f32
    %105 = vector.broadcast %cst_45 : f32 to vector<8x128xf32>
    %106 = arith.addf %105, %104 : vector<8x128xf32>
    %107 = arith.divf %105, %106 : vector<8x128xf32>
    %c0_46 = arith.constant 0 : index
    %c0_47 = arith.constant 0 : index
    %108 = vector.load %arg8[%c0_46, %c0_47] : memref<8x128xf32, #tpu.memory_space<vmem>>, vector<8x128xf32>
    %109 = arith.mulf %99, %108 : vector<8x128xf32>
    %110 = arith.mulf %93, %101 : vector<8x128xf32>
    %111 = arith.addf %109, %110 : vector<8x128xf32>
    %112 = math.tanh %111 : vector<8x128xf32>
    %113 = arith.mulf %107, %112 : vector<8x128xf32>
    %c0_48 = arith.constant 0 : index
    %c0_49 = arith.constant 0 : index
    %114 = vector.load %arg8[%c0_48, %c0_49] : memref<8x128xf32, #tpu.memory_space<vmem>>, vector<8x128xf32>
    tpu.vector_store %arg8[%c0_48, %c0_49], %111 {strides = array<i32>} : memref<8x128xf32, #tpu.memory_space<vmem>>, vector<8x128xf32>,
    %c0_50 = arith.constant 0 : index
    %c0_51 = arith.constant 0 : index
    %115 = vector.load %arg7[%c0_50, %c0_51] : memref<8x128xf32, #tpu.memory_space<vmem>>, vector<8x128xf32>
    tpu.vector_store %arg7[%c0_50, %c0_51], %113 {strides = array<i32>} : memref<8x128xf32, #tpu.memory_space<vmem>>, vector<8x128xf32>,
    %116 = arith.index_cast %c2_i32 : i32 to index
    %c0_52 = arith.constant 0 : index
    %c0_53 = arith.constant 0 : index
    %117 = vector.load %arg4[%116, %c0_52, %c0_53] : memref<8x8x128xf32, #tpu.memory_space<vmem>>, vector<1x8x128xf32>
    %118 = vector.shape_cast %117 : vector<1x8x128xf32> to vector<8x128xf32>
    %119 = vector.shape_cast %113 : vector<8x128xf32> to vector<1x8x128xf32>
    tpu.vector_store %arg4[%116, %c0_52, %c0_53], %119 {strides = array<i32>} : memref<8x8x128xf32, #tpu.memory_space<vmem>>, vector<1x8x128xf32>,
    %c3_i32 = arith.constant 3 : i32
    %120 = arith.index_cast %c3_i32 : i32 to index
    %c0_54 = arith.constant 0 : index
    %c0_55 = arith.constant 0 : index
    %121 = vector.load %arg2[%120, %c0_54, %c0_55] : memref<8x8x512xf32, #tpu.memory_space<vmem>>, vector<1x8x512xf32>
    %122 = vector.shape_cast %121 : vector<1x8x512xf32> to vector<8x512xf32>
    %c0_56 = arith.constant 0 : index
    %c0_57 = arith.constant 0 : index
    %123 = vector.load %arg7[%c0_56, %c0_57] : memref<8x128xf32, #tpu.memory_space<vmem>>, vector<8x128xf32>
    %c0_58 = arith.constant 0 : index
    %c0_59 = arith.constant 0 : index
    %124 = vector.load %arg6[%c0_58, %c0_59] : memref<128x512xf32, #tpu.memory_space<vmem>>, vector<128x512xf32>
    %cst_60 = arith.constant dense<0.000000e+00> : vector<8x512xf32>
    %125 = tpu.matmul %123, %124, %cst_60 {dimension_numbers = #tpu.dot_dimension_numbers<[1], [0], [0], [1], [0, 0, 1, 1], [], []>} : vector<8x128xf32>, vector<128x512xf32>, vector<8x512xf32> -> vector<8x512xf32>
    %126 = arith.addf %122, %125 : vector<8x512xf32>
    %127 = vector.extract_strided_slice %126 {offsets = [0, 0], sizes = [8, 128], strides = [1, 1]} : vector<8x512xf32> to vector<8x128xf32>
    %128 = arith.negf %127 : vector<8x128xf32>
    %129 = math.exp %128 : vector<8x128xf32>
    %cst_61 = arith.constant 1.000000e+00 : f32
    %130 = vector.broadcast %cst_61 : f32 to vector<8x128xf32>
    %131 = arith.addf %130, %129 : vector<8x128xf32>
    %132 = arith.divf %130, %131 : vector<8x128xf32>
    %133 = vector.extract_strided_slice %126 {offsets = [0, 128], sizes = [8, 128], strides = [1, 1]} : vector<8x512xf32> to vector<8x128xf32>
    %134 = arith.negf %133 : vector<8x128xf32>
    %135 = math.exp %134 : vector<8x128xf32>
    %cst_62 = arith.constant 1.000000e+00 : f32
    %136 = vector.broadcast %cst_62 : f32 to vector<8x128xf32>
    %137 = arith.addf %136, %135 : vector<8x128xf32>
    %138 = arith.divf %136, %137 : vector<8x128xf32>
    %139 = vector.extract_strided_slice %126 {offsets = [0, 256], sizes = [8, 128], strides = [1, 1]} : vector<8x512xf32> to vector<8x128xf32>
    %140 = math.tanh %139 : vector<8x128xf32>
    %141 = vector.extract_strided_slice %126 {offsets = [0, 384], sizes = [8, 128], strides = [1, 1]} : vector<8x512xf32> to vector<8x128xf32>
    %142 = arith.negf %141 : vector<8x128xf32>
    %143 = math.exp %142 : vector<8x128xf32>
    %cst_63 = arith.constant 1.000000e+00 : f32
    %144 = vector.broadcast %cst_63 : f32 to vector<8x128xf32>
    %145 = arith.addf %144, %143 : vector<8x128xf32>
    %146 = arith.divf %144, %145 : vector<8x128xf32>
    %c0_64 = arith.constant 0 : index
    %c0_65 = arith.constant 0 : index
    %147 = vector.load %arg8[%c0_64, %c0_65] : memref<8x128xf32, #tpu.memory_space<vmem>>, vector<8x128xf32>
    %148 = arith.mulf %138, %147 : vector<8x128xf32>
    %149 = arith.mulf %132, %140 : vector<8x128xf32>
    %150 = arith.addf %148, %149 : vector<8x128xf32>
    %151 = math.tanh %150 : vector<8x128xf32>
    %152 = arith.mulf %146, %151 : vector<8x128xf32>
    %c0_66 = arith.constant 0 : index
    %c0_67 = arith.constant 0 : index
    %153 = vector.load %arg8[%c0_66, %c0_67] : memref<8x128xf32, #tpu.memory_space<vmem>>, vector<8x128xf32>
    tpu.vector_store %arg8[%c0_66, %c0_67], %150 {strides = array<i32>} : memref<8x128xf32, #tpu.memory_space<vmem>>, vector<8x128xf32>,
    %c0_68 = arith.constant 0 : index
    %c0_69 = arith.constant 0 : index
    %154 = vector.load %arg7[%c0_68, %c0_69] : memref<8x128xf32, #tpu.memory_space<vmem>>, vector<8x128xf32>
    tpu.vector_store %arg7[%c0_68, %c0_69], %152 {strides = array<i32>} : memref<8x128xf32, #tpu.memory_space<vmem>>, vector<8x128xf32>,
    %155 = arith.index_cast %c3_i32 : i32 to index
    %c0_70 = arith.constant 0 : index
    %c0_71 = arith.constant 0 : index
    %156 = vector.load %arg4[%155, %c0_70, %c0_71] : memref<8x8x128xf32, #tpu.memory_space<vmem>>, vector<1x8x128xf32>
    %157 = vector.shape_cast %156 : vector<1x8x128xf32> to vector<8x128xf32>
    %158 = vector.shape_cast %152 : vector<8x128xf32> to vector<1x8x128xf32>
    tpu.vector_store %arg4[%155, %c0_70, %c0_71], %158 {strides = array<i32>} : memref<8x8x128xf32, #tpu.memory_space<vmem>>, vector<1x8x128xf32>,
    %c4_i32 = arith.constant 4 : i32
    %159 = arith.index_cast %c4_i32 : i32 to index
    %c0_72 = arith.constant 0 : index
    %c0_73 = arith.constant 0 : index
    %160 = vector.load %arg2[%159, %c0_72, %c0_73] : memref<8x8x512xf32, #tpu.memory_space<vmem>>, vector<1x8x512xf32>
    %161 = vector.shape_cast %160 : vector<1x8x512xf32> to vector<8x512xf32>
    %c0_74 = arith.constant 0 : index
    %c0_75 = arith.constant 0 : index
    %162 = vector.load %arg7[%c0_74, %c0_75] : memref<8x128xf32, #tpu.memory_space<vmem>>, vector<8x128xf32>
    %c0_76 = arith.constant 0 : index
    %c0_77 = arith.constant 0 : index
    %163 = vector.load %arg6[%c0_76, %c0_77] : memref<128x512xf32, #tpu.memory_space<vmem>>, vector<128x512xf32>
    %cst_78 = arith.constant dense<0.000000e+00> : vector<8x512xf32>
    %164 = tpu.matmul %162, %163, %cst_78 {dimension_numbers = #tpu.dot_dimension_numbers<[1], [0], [0], [1], [0, 0, 1, 1], [], []>} : vector<8x128xf32>, vector<128x512xf32>, vector<8x512xf32> -> vector<8x512xf32>
    %165 = arith.addf %161, %164 : vector<8x512xf32>
    %166 = vector.extract_strided_slice %165 {offsets = [0, 0], sizes = [8, 128], strides = [1, 1]} : vector<8x512xf32> to vector<8x128xf32>
    %167 = arith.negf %166 : vector<8x128xf32>
    %168 = math.exp %167 : vector<8x128xf32>
    %cst_79 = arith.constant 1.000000e+00 : f32
    %169 = vector.broadcast %cst_79 : f32 to vector<8x128xf32>
    %170 = arith.addf %169, %168 : vector<8x128xf32>
    %171 = arith.divf %169, %170 : vector<8x128xf32>
    %172 = vector.extract_strided_slice %165 {offsets = [0, 128], sizes = [8, 128], strides = [1, 1]} : vector<8x512xf32> to vector<8x128xf32>
    %173 = arith.negf %172 : vector<8x128xf32>
    %174 = math.exp %173 : vector<8x128xf32>
    %cst_80 = arith.constant 1.000000e+00 : f32
    %175 = vector.broadcast %cst_80 : f32 to vector<8x128xf32>
    %176 = arith.addf %175, %174 : vector<8x128xf32>
    %177 = arith.divf %175, %176 : vector<8x128xf32>
    %178 = vector.extract_strided_slice %165 {offsets = [0, 256], sizes = [8, 128], strides = [1, 1]} : vector<8x512xf32> to vector<8x128xf32>
    %179 = math.tanh %178 : vector<8x128xf32>
    %180 = vector.extract_strided_slice %165 {offsets = [0, 384], sizes = [8, 128], strides = [1, 1]} : vector<8x512xf32> to vector<8x128xf32>
    %181 = arith.negf %180 : vector<8x128xf32>
    %182 = math.exp %181 : vector<8x128xf32>
    %cst_81 = arith.constant 1.000000e+00 : f32
    %183 = vector.broadcast %cst_81 : f32 to vector<8x128xf32>
    %184 = arith.addf %183, %182 : vector<8x128xf32>
    %185 = arith.divf %183, %184 : vector<8x128xf32>
    %c0_82 = arith.constant 0 : index
    %c0_83 = arith.constant 0 : index
    %186 = vector.load %arg8[%c0_82, %c0_83] : memref<8x128xf32, #tpu.memory_space<vmem>>, vector<8x128xf32>
    %187 = arith.mulf %177, %186 : vector<8x128xf32>
    %188 = arith.mulf %171, %179 : vector<8x128xf32>
    %189 = arith.addf %187, %188 : vector<8x128xf32>
    %190 = math.tanh %189 : vector<8x128xf32>
    %191 = arith.mulf %185, %190 : vector<8x128xf32>
    %c0_84 = arith.constant 0 : index
    %c0_85 = arith.constant 0 : index
    %192 = vector.load %arg8[%c0_84, %c0_85] : memref<8x128xf32, #tpu.memory_space<vmem>>, vector<8x128xf32>
    tpu.vector_store %arg8[%c0_84, %c0_85], %189 {strides = array<i32>} : memref<8x128xf32, #tpu.memory_space<vmem>>, vector<8x128xf32>,
    %c0_86 = arith.constant 0 : index
    %c0_87 = arith.constant 0 : index
    %193 = vector.load %arg7[%c0_86, %c0_87] : memref<8x128xf32, #tpu.memory_space<vmem>>, vector<8x128xf32>
    tpu.vector_store %arg7[%c0_86, %c0_87], %191 {strides = array<i32>} : memref<8x128xf32, #tpu.memory_space<vmem>>, vector<8x128xf32>,
    %194 = arith.index_cast %c4_i32 : i32 to index
    %c0_88 = arith.constant 0 : index
    %c0_89 = arith.constant 0 : index
    %195 = vector.load %arg4[%194, %c0_88, %c0_89] : memref<8x8x128xf32, #tpu.memory_space<vmem>>, vector<1x8x128xf32>
    %196 = vector.shape_cast %195 : vector<1x8x128xf32> to vector<8x128xf32>
    %197 = vector.shape_cast %191 : vector<8x128xf32> to vector<1x8x128xf32>
    tpu.vector_store %arg4[%194, %c0_88, %c0_89], %197 {strides = array<i32>} : memref<8x8x128xf32, #tpu.memory_space<vmem>>, vector<1x8x128xf32>,
    %c5_i32 = arith.constant 5 : i32
    %198 = arith.index_cast %c5_i32 : i32 to index
    %c0_90 = arith.constant 0 : index
    %c0_91 = arith.constant 0 : index
    %199 = vector.load %arg2[%198, %c0_90, %c0_91] : memref<8x8x512xf32, #tpu.memory_space<vmem>>, vector<1x8x512xf32>
    %200 = vector.shape_cast %199 : vector<1x8x512xf32> to vector<8x512xf32>
    %c0_92 = arith.constant 0 : index
    %c0_93 = arith.constant 0 : index
    %201 = vector.load %arg7[%c0_92, %c0_93] : memref<8x128xf32, #tpu.memory_space<vmem>>, vector<8x128xf32>
    %c0_94 = arith.constant 0 : index
    %c0_95 = arith.constant 0 : index
    %202 = vector.load %arg6[%c0_94, %c0_95] : memref<128x512xf32, #tpu.memory_space<vmem>>, vector<128x512xf32>
    %cst_96 = arith.constant dense<0.000000e+00> : vector<8x512xf32>
    %203 = tpu.matmul %201, %202, %cst_96 {dimension_numbers = #tpu.dot_dimension_numbers<[1], [0], [0], [1], [0, 0, 1, 1], [], []>} : vector<8x128xf32>, vector<128x512xf32>, vector<8x512xf32> -> vector<8x512xf32>
    %204 = arith.addf %200, %203 : vector<8x512xf32>
    %205 = vector.extract_strided_slice %204 {offsets = [0, 0], sizes = [8, 128], strides = [1, 1]} : vector<8x512xf32> to vector<8x128xf32>
    %206 = arith.negf %205 : vector<8x128xf32>
    %207 = math.exp %206 : vector<8x128xf32>
    %cst_97 = arith.constant 1.000000e+00 : f32
    %208 = vector.broadcast %cst_97 : f32 to vector<8x128xf32>
    %209 = arith.addf %208, %207 : vector<8x128xf32>
    %210 = arith.divf %208, %209 : vector<8x128xf32>
    %211 = vector.extract_strided_slice %204 {offsets = [0, 128], sizes = [8, 128], strides = [1, 1]} : vector<8x512xf32> to vector<8x128xf32>
    %212 = arith.negf %211 : vector<8x128xf32>
    %213 = math.exp %212 : vector<8x128xf32>
    %cst_98 = arith.constant 1.000000e+00 : f32
    %214 = vector.broadcast %cst_98 : f32 to vector<8x128xf32>
    %215 = arith.addf %214, %213 : vector<8x128xf32>
    %216 = arith.divf %214, %215 : vector<8x128xf32>
    %217 = vector.extract_strided_slice %204 {offsets = [0, 256], sizes = [8, 128], strides = [1, 1]} : vector<8x512xf32> to vector<8x128xf32>
    %218 = math.tanh %217 : vector<8x128xf32>
    %219 = vector.extract_strided_slice %204 {offsets = [0, 384], sizes = [8, 128], strides = [1, 1]} : vector<8x512xf32> to vector<8x128xf32>
    %220 = arith.negf %219 : vector<8x128xf32>
    %221 = math.exp %220 : vector<8x128xf32>
    %cst_99 = arith.constant 1.000000e+00 : f32
    %222 = vector.broadcast %cst_99 : f32 to vector<8x128xf32>
    %223 = arith.addf %222, %221 : vector<8x128xf32>
    %224 = arith.divf %222, %223 : vector<8x128xf32>
    %c0_100 = arith.constant 0 : index
    %c0_101 = arith.constant 0 : index
    %225 = vector.load %arg8[%c0_100, %c0_101] : memref<8x128xf32, #tpu.memory_space<vmem>>, vector<8x128xf32>
    %226 = arith.mulf %216, %225 : vector<8x128xf32>
    %227 = arith.mulf %210, %218 : vector<8x128xf32>
    %228 = arith.addf %226, %227 : vector<8x128xf32>
    %229 = math.tanh %228 : vector<8x128xf32>
    %230 = arith.mulf %224, %229 : vector<8x128xf32>
    %c0_102 = arith.constant 0 : index
    %c0_103 = arith.constant 0 : index
    %231 = vector.load %arg8[%c0_102, %c0_103] : memref<8x128xf32, #tpu.memory_space<vmem>>, vector<8x128xf32>
    tpu.vector_store %arg8[%c0_102, %c0_103], %228 {strides = array<i32>} : memref<8x128xf32, #tpu.memory_space<vmem>>, vector<8x128xf32>,
    %c0_104 = arith.constant 0 : index
    %c0_105 = arith.constant 0 : index
    %232 = vector.load %arg7[%c0_104, %c0_105] : memref<8x128xf32, #tpu.memory_space<vmem>>, vector<8x128xf32>
    tpu.vector_store %arg7[%c0_104, %c0_105], %230 {strides = array<i32>} : memref<8x128xf32, #tpu.memory_space<vmem>>, vector<8x128xf32>,
    %233 = arith.index_cast %c5_i32 : i32 to index
    %c0_106 = arith.constant 0 : index
    %c0_107 = arith.constant 0 : index
    %234 = vector.load %arg4[%233, %c0_106, %c0_107] : memref<8x8x128xf32, #tpu.memory_space<vmem>>, vector<1x8x128xf32>
    %235 = vector.shape_cast %234 : vector<1x8x128xf32> to vector<8x128xf32>
    %236 = vector.shape_cast %230 : vector<8x128xf32> to vector<1x8x128xf32>
    tpu.vector_store %arg4[%233, %c0_106, %c0_107], %236 {strides = array<i32>} : memref<8x8x128xf32, #tpu.memory_space<vmem>>, vector<1x8x128xf32>,
    %c6_i32 = arith.constant 6 : i32
    %237 = arith.index_cast %c6_i32 : i32 to index
    %c0_108 = arith.constant 0 : index
    %c0_109 = arith.constant 0 : index
    %238 = vector.load %arg2[%237, %c0_108, %c0_109] : memref<8x8x512xf32, #tpu.memory_space<vmem>>, vector<1x8x512xf32>
    %239 = vector.shape_cast %238 : vector<1x8x512xf32> to vector<8x512xf32>
    %c0_110 = arith.constant 0 : index
    %c0_111 = arith.constant 0 : index
    %240 = vector.load %arg7[%c0_110, %c0_111] : memref<8x128xf32, #tpu.memory_space<vmem>>, vector<8x128xf32>
    %c0_112 = arith.constant 0 : index
    %c0_113 = arith.constant 0 : index
    %241 = vector.load %arg6[%c0_112, %c0_113] : memref<128x512xf32, #tpu.memory_space<vmem>>, vector<128x512xf32>
    %cst_114 = arith.constant dense<0.000000e+00> : vector<8x512xf32>
    %242 = tpu.matmul %240, %241, %cst_114 {dimension_numbers = #tpu.dot_dimension_numbers<[1], [0], [0], [1], [0, 0, 1, 1], [], []>} : vector<8x128xf32>, vector<128x512xf32>, vector<8x512xf32> -> vector<8x512xf32>
    %243 = arith.addf %239, %242 : vector<8x512xf32>
    %244 = vector.extract_strided_slice %243 {offsets = [0, 0], sizes = [8, 128], strides = [1, 1]} : vector<8x512xf32> to vector<8x128xf32>
    %245 = arith.negf %244 : vector<8x128xf32>
    %246 = math.exp %245 : vector<8x128xf32>
    %cst_115 = arith.constant 1.000000e+00 : f32
    %247 = vector.broadcast %cst_115 : f32 to vector<8x128xf32>
    %248 = arith.addf %247, %246 : vector<8x128xf32>
    %249 = arith.divf %247, %248 : vector<8x128xf32>
    %250 = vector.extract_strided_slice %243 {offsets = [0, 128], sizes = [8, 128], strides = [1, 1]} : vector<8x512xf32> to vector<8x128xf32>
    %251 = arith.negf %250 : vector<8x128xf32>
    %252 = math.exp %251 : vector<8x128xf32>
    %cst_116 = arith.constant 1.000000e+00 : f32
    %253 = vector.broadcast %cst_116 : f32 to vector<8x128xf32>
    %254 = arith.addf %253, %252 : vector<8x128xf32>
    %255 = arith.divf %253, %254 : vector<8x128xf32>
    %256 = vector.extract_strided_slice %243 {offsets = [0, 256], sizes = [8, 128], strides = [1, 1]} : vector<8x512xf32> to vector<8x128xf32>
    %257 = math.tanh %256 : vector<8x128xf32>
    %258 = vector.extract_strided_slice %243 {offsets = [0, 384], sizes = [8, 128], strides = [1, 1]} : vector<8x512xf32> to vector<8x128xf32>
    %259 = arith.negf %258 : vector<8x128xf32>
    %260 = math.exp %259 : vector<8x128xf32>
    %cst_117 = arith.constant 1.000000e+00 : f32
    %261 = vector.broadcast %cst_117 : f32 to vector<8x128xf32>
    %262 = arith.addf %261, %260 : vector<8x128xf32>
    %263 = arith.divf %261, %262 : vector<8x128xf32>
    %c0_118 = arith.constant 0 : index
    %c0_119 = arith.constant 0 : index
    %264 = vector.load %arg8[%c0_118, %c0_119] : memref<8x128xf32, #tpu.memory_space<vmem>>, vector<8x128xf32>
    %265 = arith.mulf %255, %264 : vector<8x128xf32>
    %266 = arith.mulf %249, %257 : vector<8x128xf32>
    %267 = arith.addf %265, %266 : vector<8x128xf32>
    %268 = math.tanh %267 : vector<8x128xf32>
    %269 = arith.mulf %263, %268 : vector<8x128xf32>
    %c0_120 = arith.constant 0 : index
    %c0_121 = arith.constant 0 : index
    %270 = vector.load %arg8[%c0_120, %c0_121] : memref<8x128xf32, #tpu.memory_space<vmem>>, vector<8x128xf32>
    tpu.vector_store %arg8[%c0_120, %c0_121], %267 {strides = array<i32>} : memref<8x128xf32, #tpu.memory_space<vmem>>, vector<8x128xf32>,
    %c0_122 = arith.constant 0 : index
    %c0_123 = arith.constant 0 : index
    %271 = vector.load %arg7[%c0_122, %c0_123] : memref<8x128xf32, #tpu.memory_space<vmem>>, vector<8x128xf32>
    tpu.vector_store %arg7[%c0_122, %c0_123], %269 {strides = array<i32>} : memref<8x128xf32, #tpu.memory_space<vmem>>, vector<8x128xf32>,
    %272 = arith.index_cast %c6_i32 : i32 to index
    %c0_124 = arith.constant 0 : index
    %c0_125 = arith.constant 0 : index
    %273 = vector.load %arg4[%272, %c0_124, %c0_125] : memref<8x8x128xf32, #tpu.memory_space<vmem>>, vector<1x8x128xf32>
    %274 = vector.shape_cast %273 : vector<1x8x128xf32> to vector<8x128xf32>
    %275 = vector.shape_cast %269 : vector<8x128xf32> to vector<1x8x128xf32>
    tpu.vector_store %arg4[%272, %c0_124, %c0_125], %275 {strides = array<i32>} : memref<8x8x128xf32, #tpu.memory_space<vmem>>, vector<1x8x128xf32>,
    %c7_i32 = arith.constant 7 : i32
    %276 = arith.index_cast %c7_i32 : i32 to index
    %c0_126 = arith.constant 0 : index
    %c0_127 = arith.constant 0 : index
    %277 = vector.load %arg2[%276, %c0_126, %c0_127] : memref<8x8x512xf32, #tpu.memory_space<vmem>>, vector<1x8x512xf32>
    %278 = vector.shape_cast %277 : vector<1x8x512xf32> to vector<8x512xf32>
    %c0_128 = arith.constant 0 : index
    %c0_129 = arith.constant 0 : index
    %279 = vector.load %arg7[%c0_128, %c0_129] : memref<8x128xf32, #tpu.memory_space<vmem>>, vector<8x128xf32>
    %c0_130 = arith.constant 0 : index
    %c0_131 = arith.constant 0 : index
    %280 = vector.load %arg6[%c0_130, %c0_131] : memref<128x512xf32, #tpu.memory_space<vmem>>, vector<128x512xf32>
    %cst_132 = arith.constant dense<0.000000e+00> : vector<8x512xf32>
    %281 = tpu.matmul %279, %280, %cst_132 {dimension_numbers = #tpu.dot_dimension_numbers<[1], [0], [0], [1], [0, 0, 1, 1], [], []>} : vector<8x128xf32>, vector<128x512xf32>, vector<8x512xf32> -> vector<8x512xf32>
    %282 = arith.addf %278, %281 : vector<8x512xf32>
    %283 = vector.extract_strided_slice %282 {offsets = [0, 0], sizes = [8, 128], strides = [1, 1]} : vector<8x512xf32> to vector<8x128xf32>
    %284 = arith.negf %283 : vector<8x128xf32>
    %285 = math.exp %284 : vector<8x128xf32>
    %cst_133 = arith.constant 1.000000e+00 : f32
    %286 = vector.broadcast %cst_133 : f32 to vector<8x128xf32>
    %287 = arith.addf %286, %285 : vector<8x128xf32>
    %288 = arith.divf %286, %287 : vector<8x128xf32>
    %289 = vector.extract_strided_slice %282 {offsets = [0, 128], sizes = [8, 128], strides = [1, 1]} : vector<8x512xf32> to vector<8x128xf32>
    %290 = arith.negf %289 : vector<8x128xf32>
    %291 = math.exp %290 : vector<8x128xf32>
    %cst_134 = arith.constant 1.000000e+00 : f32
    %292 = vector.broadcast %cst_134 : f32 to vector<8x128xf32>
    %293 = arith.addf %292, %291 : vector<8x128xf32>
    %294 = arith.divf %292, %293 : vector<8x128xf32>
    %295 = vector.extract_strided_slice %282 {offsets = [0, 256], sizes = [8, 128], strides = [1, 1]} : vector<8x512xf32> to vector<8x128xf32>
    %296 = math.tanh %295 : vector<8x128xf32>
    %297 = vector.extract_strided_slice %282 {offsets = [0, 384], sizes = [8, 128], strides = [1, 1]} : vector<8x512xf32> to vector<8x128xf32>
    %298 = arith.negf %297 : vector<8x128xf32>
    %299 = math.exp %298 : vector<8x128xf32>
    %cst_135 = arith.constant 1.000000e+00 : f32
    %300 = vector.broadcast %cst_135 : f32 to vector<8x128xf32>
    %301 = arith.addf %300, %299 : vector<8x128xf32>
    %302 = arith.divf %300, %301 : vector<8x128xf32>
    %c0_136 = arith.constant 0 : index
    %c0_137 = arith.constant 0 : index
    %303 = vector.load %arg8[%c0_136, %c0_137] : memref<8x128xf32, #tpu.memory_space<vmem>>, vector<8x128xf32>
    %304 = arith.mulf %294, %303 : vector<8x128xf32>
    %305 = arith.mulf %288, %296 : vector<8x128xf32>
    %306 = arith.addf %304, %305 : vector<8x128xf32>
    %307 = math.tanh %306 : vector<8x128xf32>
    %308 = arith.mulf %302, %307 : vector<8x128xf32>
    %c0_138 = arith.constant 0 : index
    %c0_139 = arith.constant 0 : index
    %309 = vector.load %arg8[%c0_138, %c0_139] : memref<8x128xf32, #tpu.memory_space<vmem>>, vector<8x128xf32>
    tpu.vector_store %arg8[%c0_138, %c0_139], %306 {strides = array<i32>} : memref<8x128xf32, #tpu.memory_space<vmem>>, vector<8x128xf32>,
    %c0_140 = arith.constant 0 : index
    %c0_141 = arith.constant 0 : index
    %310 = vector.load %arg7[%c0_140, %c0_141] : memref<8x128xf32, #tpu.memory_space<vmem>>, vector<8x128xf32>
    tpu.vector_store %arg7[%c0_140, %c0_141], %308 {strides = array<i32>} : memref<8x128xf32, #tpu.memory_space<vmem>>, vector<8x128xf32>,
    %311 = arith.index_cast %c7_i32 : i32 to index
    %c0_142 = arith.constant 0 : index
    %c0_143 = arith.constant 0 : index
    %312 = vector.load %arg4[%311, %c0_142, %c0_143] : memref<8x8x128xf32, #tpu.memory_space<vmem>>, vector<1x8x128xf32>
    %313 = vector.shape_cast %312 : vector<1x8x128xf32> to vector<8x128xf32>
    %314 = vector.shape_cast %308 : vector<8x128xf32> to vector<1x8x128xf32>
    tpu.vector_store %arg4[%311, %c0_142, %c0_143], %314 {strides = array<i32>} : memref<8x8x128xf32, #tpu.memory_space<vmem>>, vector<1x8x128xf32>,
    %c8_i32 = arith.constant 8 : i32
    %c0_i32_144 = arith.constant 0 : i32
    %315 = arith.cmpi eq, %arg1, %c0_i32_144 : i32
    %316 = arith.extui %315 : i1 to i32
    %c0_i32_145 = arith.constant 0 : i32
    %317 = arith.cmpi ne, %316, %c0_i32_145 : i32
    scf.if %317 {
      %c0_146 = arith.constant 0 : index
      %c0_147 = arith.constant 0 : index
      %318 = vector.load %arg8[%c0_146, %c0_147] : memref<8x128xf32, #tpu.memory_space<vmem>>, vector<8x128xf32>
      %c0_148 = arith.constant 0 : index
      %c0_149 = arith.constant 0 : index
      %319 = vector.load %arg5[%c0_148, %c0_149] : memref<8x128xf32, #tpu.memory_space<vmem>>, vector<8x128xf32>
      tpu.vector_store %arg5[%c0_148, %c0_149], %318 {strides = array<i32>} : memref<8x128xf32, #tpu.memory_space<vmem>>, vector<8x128xf32>,
    } else {
    }
    return
  }
  func.func @transform_0(%arg0: i32, %arg1: i32) -> (i32, i32, i32) {
    %c0_i32 = arith.constant 0 : i32
    %c0_i32_0 = arith.constant 0 : i32
    return %arg1, %arg0, %c0_i32 : i32, i32, i32
  }
  func.func @transform_2(%arg0: i32, %arg1: i32) -> (i32, i32, i32) {
    %c0_i32 = arith.constant 0 : i32
    %c0_i32_0 = arith.constant 0 : i32
    return %arg1, %arg0, %c0_i32 : i32, i32, i32
  }
  func.func @transform_3(%arg0: i32, %arg1: i32) -> (i32, i32) {
    %c0_i32 = arith.constant 0 : i32
    %c0_i32_0 = arith.constant 0 : i32
    return %arg0, %c0_i32 : i32, i32
  }
}

</mosaic_0001>

<llo_original>
// kernel: tpu_custom_call.1
$region0: #{tpu_custom_call.1}
  #allocation0 [shape = 'u32[]', space=smem, size = 0x4, offset = 0x4, fixed_abs, tag = 'smem constant byte address 0x4 - core index']
  #allocation1 [shape = 'u32[144,128]{1,0:T(1,128)}', space=vmem, size = 0x12000, scoped, tag = 'internal scratch']
  #allocation2 [shape = 'f32[128,512]{1,0:T(8,128)}', space=vmem, size = 0x40000, scoped, tag = 'scratch operand']
  #allocation3 [shape = 'f32[8,128]{1,0:T(8,128)}', space=vmem, size = 0x1000, scoped, tag = 'scratch operand']
  #allocation4 [shape = 'f32[8,128]{1,0:T(8,128)}', space=vmem, size = 0x1000, scoped, tag = 'scratch operand']
  #allocation5 [shape = 's32[1]{0}', space=sflag, size = 0x4, scoped, tag = 'scratch operand']
  #allocation12 [shape = 's32[]', space=sflag, size = 0x4, offset = 0, fixed_abs, tag = 'sflag constant byte address 0x0 - dummy sync flag']
  #allocation13 [shape = 's32[]', space=sflag, size = 0x4, offset = 0, fixed_abs, tag = 'sflag constant byte address 0x0 - dummy sync flag']
  #allocation14 [shape = 'u32[]', space=smem, size = 0x4, offset = 0x44, fixed_abs, tag = 'smem constant byte address 0x44 - assertion arg 0']
  #allocation15 [shape = 'u32[]', space=smem, size = 0x4, offset = 0x48, fixed_abs, tag = 'smem constant byte address 0x48 - assertion arg 1']
  %s0 = inlined_call_operand.hbm [shape: f32[8,8,512], index: 0, kind: input, shape index: {}]
  %s1 = inlined_call_operand.hbm [shape: f32[128,512], index: 1, kind: input, shape index: {}]
  %s2 = inlined_call_operand.hbm [shape: f32[8,8,128], index: 2, kind: output, shape index: {0}]
  %s3 = inlined_call_operand.hbm [shape: f32[8,128], index: 3, kind: output, shape index: {1}]
  %4 = xla_tuple %s2, %s3
  %s5 = sld [smem:[#allocation0]]
  $region38: #{tpu_custom_call.1} parent=0
    _
  %s7 = ssub.s32 1, %s5
  %s8 = scalar_select 0, %s7, %s5
  $region1: #{tpu_custom_call.1} parent=0
    #allocation6 [shape = 'u8[131072]{0}', space=vmem, size = 0x20000, scoped, tag = 'input window, operand 0, single buffered']
    #allocation7 [shape = 's32[1]{0}', space=sflag, size = 0x4, scoped, tag = 'scoped memory for tpu_custom_call.1']
    #allocation8 [shape = 's32[1]{0}', space=sflag, size = 0x4, scoped, tag = 'scoped memory for tpu_custom_call.1']
    #allocation9 [shape = 'u8[32768]{0}', space=vmem, size = 0x8000, scoped, tag = 'output window, operand 0, single buffered']
    #allocation10 [shape = 'u8[4096]{0}', space=vmem, size = 0x1000, scoped, tag = 'output window, operand 1, single buffered']
    #allocation11 [shape = 's32[1]{0}', space=sflag, size = 0x4, scoped, tag = 'scoped memory for tpu_custom_call.1']
    %9 = vsyncpa [#allocation7], 0
    %10 = vsyncpa [#allocation8], 0
    %11 = vsyncpa [#allocation11], 0
    // Predicated region
    $region2: #{tpu_custom_call.1} parent=1 // pred_check
      _
    $region3: #{tpu_custom_call.1} parent=1 // pred_check_branch
      %13 = sbr.rel (0) target = $region5
    $region4: #{tpu_custom_call.1} parent=1 // pred_region
      %s15 = ssub.s32 4096, 4096
      %16 = vsyncadd [#allocation7], %s15
      %s17 = sshll.u32 [#allocation6], 4
      %s18 = int_to_ptr.vmem [resolvable:$true] %s17
      %23 = dma.hbm_to_vmem [thread:$0]  %s0, 4096, %s18, [#allocation7], 512, 512, 32
    $region5: #{tpu_custom_call.1} parent=1 // pred_fallthru
      _
    // Predicated region
    $region6: #{tpu_custom_call.1} parent=1 // pred_check
      _
    $region7: #{tpu_custom_call.1} parent=1 // pred_check_branch
      %25 = sbr.rel (0) target = $region9
    $region8: #{tpu_custom_call.1} parent=1 // pred_region
      %26 = dma.done [#allocation7], 4096
    $region9: #{tpu_custom_call.1} parent=1 // pred_fallthru
      _
    %p27 = scmp.eq.s32.totalorder 0, 0
    // Predicated region
    $region10: #{tpu_custom_call.1} parent=1 // pred_check
      %p28 = pneg %p27
    $region11: #{tpu_custom_call.1} parent=1 // pred_check_branch
      %30 = sbr.rel (%p28) target = $region13
    $region12: #{tpu_custom_call.1} parent=1 // pred_region
      // Predicated region
      $region14: #{tpu_custom_call.1} parent=12 // pred_check
        _
      $region15: #{tpu_custom_call.1} parent=12 // pred_check_branch
        %32 = sbr.rel target = $region17
      $region16: #{tpu_custom_call.1} parent=12 // pred_region
        %33 = sst [smem:[#allocation14]] [#allocation13]
        %34 = sst [smem:[#allocation15]] [#allocation12]
      $region17: #{tpu_custom_call.1} parent=12 // pred_fallthru
        _
      %36 = shalt.err (0)
      %s38 = sshll.u32 [#allocation2], 4
      %s39 = int_to_ptr.vmem [resolvable:$true] %s38
      %41 = dma.hbm_to_vmem [thread:$0]  %s1, 8192, %s39, [#allocation5]
      %s42 = smul.u32 8, 16
      %s43 = smul.u32 %s42, 4
      %s44 = sshll.u32 %s43, 4
      %45 = dma.done [#allocation5], %s44
      %46 = vst [vmem:[#allocation3] sm:$0xff] 0.0
      %47 = vst [vmem:[#allocation4] sm:$0xff] 0.0
    $region13: #{tpu_custom_call.1} parent=1 // pred_fallthru
      _
    %v48 = vld [vmem:[#allocation6] sm:$0xff]
    %v49 = vld [vmem:[#allocation6 + $0x8] sm:$0xff]
    %v50 = vld [vmem:[#allocation6 + $0x10] sm:$0xff]
    %v51 = vld [vmem:[#allocation6 + $0x18] sm:$0xff]
    %v52 = vld [vmem:[#allocation3] sm:$0xff]
    %v53 = vld [vmem:[#allocation2] sm:$0xff]
    %v54 = vld [vmem:[#allocation2 + $0x8] sm:$0xff]
    %v55 = vld [vmem:[#allocation2 + $0x10] sm:$0xff]
    %v56 = vld [vmem:[#allocation2 + $0x18] sm:$0xff]
    %v57 = vld [vmem:[#allocation2 + $0x20] sm:$0xff]
    %v58 = vld [vmem:[#allocation2 + $0x28] sm:$0xff]
    %v59 = vld [vmem:[#allocation2 + $0x30] sm:$0xff]
    %v60 = vld [vmem:[#allocation2 + $0x38] sm:$0xff]
    %v61 = vld [vmem:[#allocation2 + $0x40] sm:$0xff]
    %v62 = vld [vmem:[#allocation2 + $0x48] sm:$0xff]
    %v63 = vld [vmem:[#allocation2 + $0x50] sm:$0xff]
    %v64 = vld [vmem:[#allocation2 + $0x58] sm:$0xff]
    %v65 = vld [vmem:[#allocation2 + $0x60] sm:$0xff]
    %v66 = vld [vmem:[#allocation2 + $0x68] sm:$0xff]
    %v67 = vld [vmem:[#allocation2 + $0x70] sm:$0xff]
    %v68 = vld [vmem:[#allocation2 + $0x78] sm:$0xff]
    %v69 = vld [vmem:[#allocation2 + $0x80] sm:$0xff]
    %v70 = vld [vmem:[#allocation2 + $0x88] sm:$0xff]
    %v71 = vld [vmem:[#allocation2 + $0x90] sm:$0xff]
    %v72 = vld [vmem:[#allocation2 + $0x98] sm:$0xff]
    %v73 = vld [vmem:[#allocation2 + $0xa0] sm:$0xff]
    %v74 = vld [vmem:[#allocation2 + $0xa8] sm:$0xff]
    %v75 = vld [vmem:[#allocation2 + $0xb0] sm:$0xff]
    %v76 = vld [vmem:[#allocation2 + $0xb8] sm:$0xff]
    %v77 = vld [vmem:[#allocation2 + $0xc0] sm:$0xff]
    %v78 = vld [vmem:[#allocation2 + $0xc8] sm:$0xff]
    %v79 = vld [vmem:[#allocation2 + $0xd0] sm:$0xff]
    %v80 = vld [vmem:[#allocation2 + $0xd8] sm:$0xff]
    %v81 = vld [vmem:[#allocation2 + $0xe0] sm:$0xff]
    %v82 = vld [vmem:[#allocation2 + $0xe8] sm:$0xff]
    %v83 = vld [vmem:[#allocation2 + $0xf0] sm:$0xff]
    %v84 = vld [vmem:[#allocation2 + $0xf8] sm:$0xff]
    %v85 = vld [vmem:[#allocation2 + $0x100] sm:$0xff]
    %v86 = vld [vmem:[#allocation2 + $0x108] sm:$0xff]
    %v87 = vld [vmem:[#allocation2 + $0x110] sm:$0xff]
    %v88 = vld [vmem:[#allocation2 + $0x118] sm:$0xff]
    %v89 = vld [vmem:[#allocation2 + $0x120] sm:$0xff]
    %v90 = vld [vmem:[#allocation2 + $0x128] sm:$0xff]
    %v91 = vld [vmem:[#allocation2 + $0x130] sm:$0xff]
    %v92 = vld [vmem:[#allocation2 + $0x138] sm:$0xff]
    %v93 = vld [vmem:[#allocation2 + $0x140] sm:$0xff]
    %v94 = vld [vmem:[#allocation2 + $0x148] sm:$0xff]
    %v95 = vld [vmem:[#allocation2 + $0x150] sm:$0xff]
    %v96 = vld [vmem:[#allocation2 + $0x158] sm:$0xff]
    %v97 = vld [vmem:[#allocation2 + $0x160] sm:$0xff]
    %v98 = vld [vmem:[#allocation2 + $0x168] sm:$0xff]
    %v99 = vld [vmem:[#allocation2 + $0x170] sm:$0xff]
    %v100 = vld [vmem:[#allocation2 + $0x178] sm:$0xff]
    %v101 = vld [vmem:[#allocation2 + $0x180] sm:$0xff]
    %v102 = vld [vmem:[#allocation2 + $0x188] sm:$0xff]
    %v103 = vld [vmem:[#allocation2 + $0x190] sm:$0xff]
    %v104 = vld [vmem:[#allocation2 + $0x198] sm:$0xff]
    %v105 = vld [vmem:[#allocation2 + $0x1a0] sm:$0xff]
    %v106 = vld [vmem:[#allocation2 + $0x1a8] sm:$0xff]
    %v107 = vld [vmem:[#allocation2 + $0x1b0] sm:$0xff]
    %v108 = vld [vmem:[#allocation2 + $0x1b8] sm:$0xff]
    %v109 = vld [vmem:[#allocation2 + $0x1c0] sm:$0xff]
    %v110 = vld [vmem:[#allocation2 + $0x1c8] sm:$0xff]
    %v111 = vld [vmem:[#allocation2 + $0x1d0] sm:$0xff]
    %v112 = vld [vmem:[#allocation2 + $0x1d8] sm:$0xff]
    %v113 = vld [vmem:[#allocation2 + $0x1e0] sm:$0xff]
    %v114 = vld [vmem:[#allocation2 + $0x1e8] sm:$0xff]
    %v115 = vld [vmem:[#allocation2 + $0x1f0] sm:$0xff]
    %v116 = vld [vmem:[#allocation2 + $0x1f8] sm:$0xff]
    %117 = vmatprep.subr.mxu0 %v114
    %118 = vmatpush1.msra.mxu0 %v113
    %119 = vmatprep.subr.mxu0 %v110
    %120 = vmatpush1.msra.mxu0 %v109
    %121 = vmatprep.subr.mxu0 %v106
    %122 = vmatpush1.msra.mxu0 %v105
    %123 = vmatprep.subr.mxu0 %v102
    %124 = vmatpush1.msra.mxu0 %v101
    %125 = vmatprep.subr.mxu0 %v98
    %126 = vmatpush1.msra.mxu0 %v97
    %127 = vmatprep.subr.mxu0 %v94
    %128 = vmatpush1.msra.mxu0 %v93
    %129 = vmatprep.subr.mxu0 %v90
    %130 = vmatpush1.msra.mxu0 %v89
    %131 = vmatprep.subr.mxu0 %v86
    %132 = vmatpush1.msra.mxu0 %v85
    %133 = vmatprep.subr.mxu0 %v82
    %134 = vmatpush1.msra.mxu0 %v81
    %135 = vmatprep.subr.mxu0 %v78
    %136 = vmatpush1.msra.mxu0 %v77
    %137 = vmatprep.subr.mxu0 %v74
    %138 = vmatpush1.msra.mxu0 %v73
    %139 = vmatprep.subr.mxu0 %v70
    %140 = vmatpush1.msra.mxu0 %v69
    %141 = vmatprep.subr.mxu0 %v66
    %142 = vmatpush1.msra.mxu0 %v65
    %143 = vmatprep.subr.mxu0 %v62
    %144 = vmatpush1.msra.mxu0 %v61
    %145 = vmatprep.subr.mxu0 %v58
    %146 = vmatpush1.msra.mxu0 %v57
    %147 = vmatprep.subr.mxu0 %v54
    %148 = vmatpush1.msra.mxu0 %v53
    %149 = vmatprep.subr.mxu0 0.0
    %150 = vmatpush2.msra.mxu0 0.0
    %151 = vmatprep.subr.mxu0 0.0
    %152 = vmatpush2.msra.mxu0 0.0
    %153 = vmatprep.subr.mxu0 0.0
    %154 = vmatpush2.msra.mxu0 0.0
    %155 = vmatprep.subr.mxu0 0.0
    %156 = vmatpush2.msra.mxu0 0.0
    %157 = vmatprep.subr.mxu0 0.0
    %158 = vmatpush2.msra.mxu0 0.0
    %159 = vmatprep.subr.mxu0 0.0
    %160 = vmatpush2.msra.mxu0 0.0
    %161 = vmatprep.subr.mxu0 0.0
    %162 = vmatpush2.msra.mxu0 0.0
    %163 = vmatprep.subr.mxu0 0.0
    %164 = vmatpush2.msra.mxu0 0.0
    %165 = vmatprep.subr.mxu0 0.0
    %166 = vmatpush2.msra.mxu0 0.0
    %167 = vmatprep.subr.mxu0 0.0
    %168 = vmatpush2.msra.mxu0 0.0
    %169 = vmatprep.subr.mxu0 0.0
    %170 = vmatpush2.msra.mxu0 0.0
    %171 = vmatprep.subr.mxu0 0.0
    %172 = vmatpush2.msra.mxu0 0.0
    %173 = vmatprep.subr.mxu0 0.0
    %174 = vmatpush2.msra.mxu0 0.0
    %175 = vmatprep.subr.mxu0 0.0
    %176 = vmatpush2.msra.mxu0 0.0
    %177 = vmatprep.subr.mxu0 0.0
    %178 = vmatpush2.msra.mxu0 0.0
    %179 = vmatprep.subr.mxu0 0.0
    %180 = vmatpush2.msra.mxu0 0.0
    %181 = vmatprep.mubr.f32.mxu0 0.0
    %182 = vmatmul.mubr.f32.gmra.mxu0 %v52
    %v183 = vpop.f32.mrf.mxu0
    %v184 = vadd.f32 0.0, %v183
    %v185 = vpop.f32.mrf.mxu0
    %v186 = vadd.f32 0.0, %v185
    %187 = vdwg.mxu0
    %188 = vmatprep.subr.mxu0 %v116
    %189 = vmatpush1.msra.mxu0 %v115
    %190 = vmatprep.subr.mxu0 %v112
    %191 = vmatpush1.msra.mxu0 %v111
    %192 = vmatprep.subr.mxu0 %v108
    %193 = vmatpush1.msra.mxu0 %v107
    %194 = vmatprep.subr.mxu0 %v104
    %195 = vmatpush1.msra.mxu0 %v103
    %196 = vmatprep.subr.mxu0 %v100
    %197 = vmatpush1.msra.mxu0 %v99
    %198 = vmatprep.subr.mxu0 %v96
    %199 = vmatpush1.msra.mxu0 %v95
    %200 = vmatprep.subr.mxu0 %v92
    %201 = vmatpush1.msra.mxu0 %v91
    %202 = vmatprep.subr.mxu0 %v88
    %203 = vmatpush1.msra.mxu0 %v87
    %204 = vmatprep.subr.mxu0 %v84
    %205 = vmatpush1.msra.mxu0 %v83
    %206 = vmatprep.subr.mxu0 %v80
    %207 = vmatpush1.msra.mxu0 %v79
    %208 = vmatprep.subr.mxu0 %v76
    %209 = vmatpush1.msra.mxu0 %v75
    %210 = vmatprep.subr.mxu0 %v72
    %211 = vmatpush1.msra.mxu0 %v71
    %212 = vmatprep.subr.mxu0 %v68
    %213 = vmatpush1.msra.mxu0 %v67
    %214 = vmatprep.subr.mxu0 %v64
    %215 = vmatpush1.msra.mxu0 %v63
    %216 = vmatprep.subr.mxu0 %v60
    %217 = vmatpush1.msra.mxu0 %v59
    %218 = vmatprep.subr.mxu0 %v56
    %219 = vmatpush1.msra.mxu0 %v55
    %220 = vmatprep.subr.mxu0 0.0
    %221 = vmatpush2.msra.mxu0 0.0
    %222 = vmatprep.subr.mxu0 0.0
    %223 = vmatpush2.msra.mxu0 0.0
    %224 = vmatprep.subr.mxu0 0.0
    %225 = vmatpush2.msra.mxu0 0.0
    %226 = vmatprep.subr.mxu0 0.0
    %227 = vmatpush2.msra.mxu0 0.0
    %228 = vmatprep.subr.mxu0 0.0
    %229 = vmatpush2.msra.mxu0 0.0
    %230 = vmatprep.subr.mxu0 0.0
    %231 = vmatpush2.msra.mxu0 0.0
    %232 = vmatprep.subr.mxu0 0.0
    %233 = vmatpush2.msra.mxu0 0.0
    %234 = vmatprep.subr.mxu0 0.0
    %235 = vmatpush2.msra.mxu0 0.0
    %236 = vmatprep.subr.mxu0 0.0
    %237 = vmatpush2.msra.mxu0 0.0
    %238 = vmatprep.subr.mxu0 0.0
    %239 = vmatpush2.msra.mxu0 0.0
    %240 = vmatprep.subr.mxu0 0.0
    %241 = vmatpush2.msra.mxu0 0.0
    %242 = vmatprep.subr.mxu0 0.0
    %243 = vmatpush2.msra.mxu0 0.0
    %244 = vmatprep.subr.mxu0 0.0
    %245 = vmatpush2.msra.mxu0 0.0
    %246 = vmatprep.subr.mxu0 0.0
    %247 = vmatpush2.msra.mxu0 0.0
    %248 = vmatprep.subr.mxu0 0.0
    %249 = vmatpush2.msra.mxu0 0.0
    %250 = vmatprep.subr.mxu0 0.0
    %251 = vmatpush2.msra.mxu0 0.0
    %252 = vmatprep.mubr.f32.mxu0 0.0
    %253 = vmatmul.mubr.f32.gmra.mxu0 %v52
    %v254 = vpop.f32.mrf.mxu0
    %v255 = vadd.f32 0.0, %v254
    %v256 = vpop.f32.mrf.mxu0
    %v257 = vadd.f32 0.0, %v256
    %258 = vdwg.mxu0
    %v259 = vadd.f32 %v48, %v184
    %v260 = vadd.f32 %v49, %v186
    %v261 = vadd.f32 %v50, %v255
    %v262 = vadd.f32 %v51, %v257
    %v263 = vxor.u32 %v259, 2147483648
    %v264 = vmul.f32 %v263, 1.442695
    %v265 = vpow.pop %v264
    %v266 = vadd.f32 %v265, 1.0
    %v267 = vrcp.pop %v266
    %v268 = vmul.f32 1.0, %v267
    %v269 = vxor.u32 %v260, 2147483648
    %v270 = vmul.f32 %v269, 1.442695
    %v271 = vpow.pop %v270
    %v272 = vadd.f32 %v271, 1.0
    %v273 = vrcp.pop %v272
    %v274 = vmul.f32 1.0, %v273
    %v275 = vtanh.pop %v261
    %v276 = vxor.u32 %v262, 2147483648
    %v277 = vmul.f32 %v276, 1.442695
    %v278 = vpow.pop %v277
    %v279 = vadd.f32 %v278, 1.0
    %v280 = vrcp.pop %v279
    %v281 = vmul.f32 1.0, %v280
    %v282 = vld [vmem:[#allocation4] sm:$0xff]
    %v283 = vmul.f32 %v274, %v282
    %v284 = vmul.f32 %v268, %v275
    %v285 = vadd.f32 %v283, %v284
    %v286 = vtanh.pop %v285
    %v287 = vmul.f32 %v281, %v286
    %288 = vst [vmem:[#allocation4] sm:$0xff] %v285
    %289 = vst [vmem:[#allocation3] sm:$0xff] %v287
    %290 = vst [vmem:[#allocation9] sm:$0xff] %v287
    %s291 = scalar_lea.vmem [#allocation6], 32
    %v292 = vld [vmem:[%s291] sm:$0xff]
    %v293 = vld [vmem:[%s291 + $0x8] sm:$0xff]
    %v294 = vld [vmem:[%s291 + $0x10] sm:$0xff]
    %v295 = vld [vmem:[%s291 + $0x18] sm:$0xff]
    %v296 = vld [vmem:[#allocation3] sm:$0xff]
    %v297 = vld [vmem:[#allocation2] sm:$0xff]
    %v298 = vld [vmem:[#allocation2 + $0x8] sm:$0xff]
    %v299 = vld [vmem:[#allocation2 + $0x10] sm:$0xff]
    %v300 = vld [vmem:[#allocation2 + $0x18] sm:$0xff]
    %v301 = vld [vmem:[#allocation2 + $0x20] sm:$0xff]
    %v302 = vld [vmem:[#allocation2 + $0x28] sm:$0xff]
    %v303 = vld [vmem:[#allocation2 + $0x30] sm:$0xff]
    %v304 = vld [vmem:[#allocation2 + $0x38] sm:$0xff]
    %v305 = vld [vmem:[#allocation2 + $0x40] sm:$0xff]
    %v306 = vld [vmem:[#allocation2 + $0x48] sm:$0xff]
    %v307 = vld [vmem:[#allocation2 + $0x50] sm:$0xff]
    %v308 = vld [vmem:[#allocation2 + $0x58] sm:$0xff]
    %v309 = vld [vmem:[#allocation2 + $0x60] sm:$0xff]
    %v310 = vld [vmem:[#allocation2 + $0x68] sm:$0xff]
    %v311 = vld [vmem:[#allocation2 + $0x70] sm:$0xff]
    %v312 = vld [vmem:[#allocation2 + $0x78] sm:$0xff]
    %v313 = vld [vmem:[#allocation2 + $0x80] sm:$0xff]
    %v314 = vld [vmem:[#allocation2 + $0x88] sm:$0xff]
    %v315 = vld [vmem:[#allocation2 + $0x90] sm:$0xff]
    %v316 = vld [vmem:[#allocation2 + $0x98] sm:$0xff]
    %v317 = vld [vmem:[#allocation2 + $0xa0] sm:$0xff]
    %v318 = vld [vmem:[#allocation2 + $0xa8] sm:$0xff]
    %v319 = vld [vmem:[#allocation2 + $0xb0] sm:$0xff]
    %v320 = vld [vmem:[#allocation2 + $0xb8] sm:$0xff]
    %v321 = vld [vmem:[#allocation2 + $0xc0] sm:$0xff]
    %v322 = vld [vmem:[#allocation2 + $0xc8] sm:$0xff]
    %v323 = vld [vmem:[#allocation2 + $0xd0] sm:$0xff]
    %v324 = vld [vmem:[#allocation2 + $0xd8] sm:$0xff]
    %v325 = vld [vmem:[#allocation2 + $0xe0] sm:$0xff]
    %v326 = vld [vmem:[#allocation2 + $0xe8] sm:$0xff]
    %v327 = vld [vmem:[#allocation2 + $0xf0] sm:$0xff]
    %v328 = vld [vmem:[#allocation2 + $0xf8] sm:$0xff]
    %v329 = vld [vmem:[#allocation2 + $0x100] sm:$0xff]
    %v330 = vld [vmem:[#allocation2 + $0x108] sm:$0xff]
    %v331 = vld [vmem:[#allocation2 + $0x110] sm:$0xff]
    %v332 = vld [vmem:[#allocation2 + $0x118] sm:$0xff]
    %v333 = vld [vmem:[#allocation2 + $0x120] sm:$0xff]
    %v334 = vld [vmem:[#allocation2 + $0x128] sm:$0xff]
    %v335 = vld [vmem:[#allocation2 + $0x130] sm:$0xff]
    %v336 = vld [vmem:[#allocation2 + $0x138] sm:$0xff]
    %v337 = vld [vmem:[#allocation2 + $0x140] sm:$0xff]
    %v338 = vld [vmem:[#allocation2 + $0x148] sm:$0xff]
    %v339 = vld [vmem:[#allocation2 + $0x150] sm:$0xff]
    %v340 = vld [vmem:[#allocation2 + $0x158] sm:$0xff]
    %v341 = vld [vmem:[#allocation2 + $0x160] sm:$0xff]
    %v342 = vld [vmem:[#allocation2 + $0x168] sm:$0xff]
    %v343 = vld [vmem:[#allocation2 + $0x170] sm:$0xff]
    %v344 = vld [vmem:[#allocation2 + $0x178] sm:$0xff]
    %v345 = vld [vmem:[#allocation2 + $0x180] sm:$0xff]
    %v346 = vld [vmem:[#allocation2 + $0x188] sm:$0xff]
    %v347 = vld [vmem:[#allocation2 + $0x190] sm:$0xff]
    %v348 = vld [vmem:[#allocation2 + $0x198] sm:$0xff]
    %v349 = vld [vmem:[#allocation2 + $0x1a0] sm:$0xff]
    %v350 = vld [vmem:[#allocation2 + $0x1a8] sm:$0xff]
    %v351 = vld [vmem:[#allocation2 + $0x1b0] sm:$0xff]
    %v352 = vld [vmem:[#allocation2 + $0x1b8] sm:$0xff]
    %v353 = vld [vmem:[#allocation2 + $0x1c0] sm:$0xff]
    %v354 = vld [vmem:[#allocation2 + $0x1c8] sm:$0xff]
    %v355 = vld [vmem:[#allocation2 + $0x1d0] sm:$0xff]
    %v356 = vld [vmem:[#allocation2 + $0x1d8] sm:$0xff]
    %v357 = vld [vmem:[#allocation2 + $0x1e0] sm:$0xff]
    %v358 = vld [vmem:[#allocation2 + $0x1e8] sm:$0xff]
    %v359 = vld [vmem:[#allocation2 + $0x1f0] sm:$0xff]
    %v360 = vld [vmem:[#allocation2 + $0x1f8] sm:$0xff]
    %361 = vmatprep.subr.mxu0 %v358
    %362 = vmatpush1.msra.mxu0 %v357
    %363 = vmatprep.subr.mxu0 %v354
    %364 = vmatpush1.msra.mxu0 %v353
    %365 = vmatprep.subr.mxu0 %v350
    %366 = vmatpush1.msra.mxu0 %v349
    %367 = vmatprep.subr.mxu0 %v346
    %368 = vmatpush1.msra.mxu0 %v345
    %369 = vmatprep.subr.mxu0 %v342
    %370 = vmatpush1.msra.mxu0 %v341
    %371 = vmatprep.subr.mxu0 %v338
    %372 = vmatpush1.msra.mxu0 %v337
    %373 = vmatprep.subr.mxu0 %v334
    %374 = vmatpush1.msra.mxu0 %v333
    %375 = vmatprep.subr.mxu0 %v330
    %376 = vmatpush1.msra.mxu0 %v329
    %377 = vmatprep.subr.mxu0 %v326
    %378 = vmatpush1.msra.mxu0 %v325
    %379 = vmatprep.subr.mxu0 %v322
    %380 = vmatpush1.msra.mxu0 %v321
    %381 = vmatprep.subr.mxu0 %v318
    %382 = vmatpush1.msra.mxu0 %v317
    %383 = vmatprep.subr.mxu0 %v314
    %384 = vmatpush1.msra.mxu0 %v313
    %385 = vmatprep.subr.mxu0 %v310
    %386 = vmatpush1.msra.mxu0 %v309
    %387 = vmatprep.subr.mxu0 %v306
    %388 = vmatpush1.msra.mxu0 %v305
    %389 = vmatprep.subr.mxu0 %v302
    %390 = vmatpush1.msra.mxu0 %v301
    %391 = vmatprep.subr.mxu0 %v298
    %392 = vmatpush1.msra.mxu0 %v297
    %393 = vmatprep.subr.mxu0 0.0
    %394 = vmatpush2.msra.mxu0 0.0
    %395 = vmatprep.subr.mxu0 0.0
    %396 = vmatpush2.msra.mxu0 0.0
    %397 = vmatprep.subr.mxu0 0.0
    %398 = vmatpush2.msra.mxu0 0.0
    %399 = vmatprep.subr.mxu0 0.0
    %400 = vmatpush2.msra.mxu0 0.0
    %401 = vmatprep.subr.mxu0 0.0
    %402 = vmatpush2.msra.mxu0 0.0
    %403 = vmatprep.subr.mxu0 0.0
    %404 = vmatpush2.msra.mxu0 0.0
    %405 = vmatprep.subr.mxu0 0.0
    %406 = vmatpush2.msra.mxu0 0.0
    %407 = vmatprep.subr.mxu0 0.0
    %408 = vmatpush2.msra.mxu0 0.0
    %409 = vmatprep.subr.mxu0 0.0
    %410 = vmatpush2.msra.mxu0 0.0
    %411 = vmatprep.subr.mxu0 0.0
    %412 = vmatpush2.msra.mxu0 0.0
    %413 = vmatprep.subr.mxu0 0.0
    %414 = vmatpush2.msra.mxu0 0.0
    %415 = vmatprep.subr.mxu0 0.0
    %416 = vmatpush2.msra.mxu0 0.0
    %417 = vmatprep.subr.mxu0 0.0
    %418 = vmatpush2.msra.mxu0 0.0
    %419 = vmatprep.subr.mxu0 0.0
    %420 = vmatpush2.msra.mxu0 0.0
    %421 = vmatprep.subr.mxu0 0.0
    %422 = vmatpush2.msra.mxu0 0.0
    %423 = vmatprep.subr.mxu0 0.0
    %424 = vmatpush2.msra.mxu0 0.0
    %425 = vmatprep.mubr.f32.mxu0 0.0
    %426 = vmatmul.mubr.f32.gmra.mxu0 %v296
    %v427 = vpop.f32.mrf.mxu0
    %v428 = vadd.f32 0.0, %v427
    %v429 = vpop.f32.mrf.mxu0
    %v430 = vadd.f32 0.0, %v429
    %431 = vdwg.mxu0
    %432 = vmatprep.subr.mxu0 %v360
    %433 = vmatpush1.msra.mxu0 %v359
    %434 = vmatprep.subr.mxu0 %v356
    %435 = vmatpush1.msra.mxu0 %v355
    %436 = vmatprep.subr.mxu0 %v352
    %437 = vmatpush1.msra.mxu0 %v351
    %438 = vmatprep.subr.mxu0 %v348
    %439 = vmatpush1.msra.mxu0 %v347
    %440 = vmatprep.subr.mxu0 %v344
    %441 = vmatpush1.msra.mxu0 %v343
    %442 = vmatprep.subr.mxu0 %v340
    %443 = vmatpush1.msra.mxu0 %v339
    %444 = vmatprep.subr.mxu0 %v336
    %445 = vmatpush1.msra.mxu0 %v335
    %446 = vmatprep.subr.mxu0 %v332
    %447 = vmatpush1.msra.mxu0 %v331
    %448 = vmatprep.subr.mxu0 %v328
    %449 = vmatpush1.msra.mxu0 %v327
    %450 = vmatprep.subr.mxu0 %v324
    %451 = vmatpush1.msra.mxu0 %v323
    %452 = vmatprep.subr.mxu0 %v320
    %453 = vmatpush1.msra.mxu0 %v319
    %454 = vmatprep.subr.mxu0 %v316
    %455 = vmatpush1.msra.mxu0 %v315
    %456 = vmatprep.subr.mxu0 %v312
    %457 = vmatpush1.msra.mxu0 %v311
    %458 = vmatprep.subr.mxu0 %v308
    %459 = vmatpush1.msra.mxu0 %v307
    %460 = vmatprep.subr.mxu0 %v304
    %461 = vmatpush1.msra.mxu0 %v303
    %462 = vmatprep.subr.mxu0 %v300
    %463 = vmatpush1.msra.mxu0 %v299
    %464 = vmatprep.subr.mxu0 0.0
    %465 = vmatpush2.msra.mxu0 0.0
    %466 = vmatprep.subr.mxu0 0.0
    %467 = vmatpush2.msra.mxu0 0.0
    %468 = vmatprep.subr.mxu0 0.0
    %469 = vmatpush2.msra.mxu0 0.0
    %470 = vmatprep.subr.mxu0 0.0
    %471 = vmatpush2.msra.mxu0 0.0
    %472 = vmatprep.subr.mxu0 0.0
    %473 = vmatpush2.msra.mxu0 0.0
    %474 = vmatprep.subr.mxu0 0.0
    %475 = vmatpush2.msra.mxu0 0.0
    %476 = vmatprep.subr.mxu0 0.0
    %477 = vmatpush2.msra.mxu0 0.0
    %478 = vmatprep.subr.mxu0 0.0
    %479 = vmatpush2.msra.mxu0 0.0
    %480 = vmatprep.subr.mxu0 0.0
    %481 = vmatpush2.msra.mxu0 0.0
    %482 = vmatprep.subr.mxu0 0.0
    %483 = vmatpush2.msra.mxu0 0.0
    %484 = vmatprep.subr.mxu0 0.0
    %485 = vmatpush2.msra.mxu0 0.0
    %486 = vmatprep.subr.mxu0 0.0
    %487 = vmatpush2.msra.mxu0 0.0
    %488 = vmatprep.subr.mxu0 0.0
    %489 = vmatpush2.msra.mxu0 0.0
    %490 = vmatprep.subr.mxu0 0.0
    %491 = vmatpush2.msra.mxu0 0.0
    %492 = vmatprep.subr.mxu0 0.0
    %493 = vmatpush2.msra.mxu0 0.0
    %494 = vmatprep.subr.mxu0 0.0
    %495 = vmatpush2.msra.mxu0 0.0
    %496 = vmatprep.mubr.f32.mxu0 0.0
    %497 = vmatmul.mubr.f32.gmra.mxu0 %v296
    %v498 = vpop.f32.mrf.mxu0
    %v499 = vadd.f32 0.0, %v498
    %v500 = vpop.f32.mrf.mxu0
    %v501 = vadd.f32 0.0, %v500
    %502 = vdwg.mxu0
    %v503 = vadd.f32 %v292, %v428
    %v504 = vadd.f32 %v293, %v430
    %v505 = vadd.f32 %v294, %v499
    %v506 = vadd.f32 %v295, %v501
    %v507 = vxor.u32 %v503, 2147483648
    %v508 = vmul.f32 %v507, 1.442695
    %v509 = vpow.pop %v508
    %v510 = vadd.f32 %v509, 1.0
    %v511 = vrcp.pop %v510
    %v512 = vmul.f32 1.0, %v511
    %v513 = vxor.u32 %v504, 2147483648
    %v514 = vmul.f32 %v513, 1.442695
    %v515 = vpow.pop %v514
    %v516 = vadd.f32 %v515, 1.0
    %v517 = vrcp.pop %v516
    %v518 = vmul.f32 1.0, %v517
    %v519 = vtanh.pop %v505
    %v520 = vxor.u32 %v506, 2147483648
    %v521 = vmul.f32 %v520, 1.442695
    %v522 = vpow.pop %v521
    %v523 = vadd.f32 %v522, 1.0
    %v524 = vrcp.pop %v523
    %v525 = vmul.f32 1.0, %v524
    %v526 = vld [vmem:[#allocation4] sm:$0xff]
    %v527 = vmul.f32 %v518, %v526
    %v528 = vmul.f32 %v512, %v519
    %v529 = vadd.f32 %v527, %v528
    %v530 = vtanh.pop %v529
    %v531 = vmul.f32 %v525, %v530
    %532 = vst [vmem:[#allocation4] sm:$0xff] %v529
    %533 = vst [vmem:[#allocation3] sm:$0xff] %v531
    %s534 = scalar_lea.vmem [#allocation9], 8
    %535 = vst [vmem:[%s534] sm:$0xff] %v531
    %s536 = scalar_lea.vmem [#allocation6], 64
    %v537 = vld [vmem:[%s536] sm:$0xff]
    %v538 = vld [vmem:[%s536 + $0x8] sm:$0xff]
    %v539 = vld [vmem:[%s536 + $0x10] sm:$0xff]
    %v540 = vld [vmem:[%s536 + $0x18] sm:$0xff]
    %v541 = vld [vmem:[#allocation3] sm:$0xff]
    %v542 = vld [vmem:[#allocation2] sm:$0xff]
    %v543 = vld [vmem:[#allocation2 + $0x8] sm:$0xff]
    %v544 = vld [vmem:[#allocation2 + $0x10] sm:$0xff]
    %v545 = vld [vmem:[#allocation2 + $0x18] sm:$0xff]
    %v546 = vld [vmem:[#allocation2 + $0x20] sm:$0xff]
    %v547 = vld [vmem:[#allocation2 + $0x28] sm:$0xff]
    %v548 = vld [vmem:[#allocation2 + $0x30] sm:$0xff]
    %v549 = vld [vmem:[#allocation2 + $0x38] sm:$0xff]
    %v550 = vld [vmem:[#allocation2 + $0x40] sm:$0xff]
    %v551 = vld [vmem:[#allocation2 + $0x48] sm:$0xff]
    %v552 = vld [vmem:[#allocation2 + $0x50] sm:$0xff]
    %v553 = vld [vmem:[#allocation2 + $0x58] sm:$0xff]
    %v554 = vld [vmem:[#allocation2 + $0x60] sm:$0xff]
    %v555 = vld [vmem:[#allocation2 + $0x68] sm:$0xff]
    %v556 = vld [vmem:[#allocation2 + $0x70] sm:$0xff]
    %v557 = vld [vmem:[#allocation2 + $0x78] sm:$0xff]
    %v558 = vld [vmem:[#allocation2 + $0x80] sm:$0xff]
    %v559 = vld [vmem:[#allocation2 + $0x88] sm:$0xff]
    %v560 = vld [vmem:[#allocation2 + $0x90] sm:$0xff]
    %v561 = vld [vmem:[#allocation2 + $0x98] sm:$0xff]
    %v562 = vld [vmem:[#allocation2 + $0xa0] sm:$0xff]
    %v563 = vld [vmem:[#allocation2 + $0xa8] sm:$0xff]
    %v564 = vld [vmem:[#allocation2 + $0xb0] sm:$0xff]
    %v565 = vld [vmem:[#allocation2 + $0xb8] sm:$0xff]
    %v566 = vld [vmem:[#allocation2 + $0xc0] sm:$0xff]
    %v567 = vld [vmem:[#allocation2 + $0xc8] sm:$0xff]
    %v568 = vld [vmem:[#allocation2 + $0xd0] sm:$0xff]
    %v569 = vld [vmem:[#allocation2 + $0xd8] sm:$0xff]
    %v570 = vld [vmem:[#allocation2 + $0xe0] sm:$0xff]
    %v571 = vld [vmem:[#allocation2 + $0xe8] sm:$0xff]
    %v572 = vld [vmem:[#allocation2 + $0xf0] sm:$0xff]
    %v573 = vld [vmem:[#allocation2 + $0xf8] sm:$0xff]
    %v574 = vld [vmem:[#allocation2 + $0x100] sm:$0xff]
    %v575 = vld [vmem:[#allocation2 + $0x108] sm:$0xff]
    %v576 = vld [vmem:[#allocation2 + $0x110] sm:$0xff]
    %v577 = vld [vmem:[#allocation2 + $0x118] sm:$0xff]
    %v578 = vld [vmem:[#allocation2 + $0x120] sm:$0xff]
    %v579 = vld [vmem:[#allocation2 + $0x128] sm:$0xff]
    %v580 = vld [vmem:[#allocation2 + $0x130] sm:$0xff]
    %v581 = vld [vmem:[#allocation2 + $0x138] sm:$0xff]
    %v582 = vld [vmem:[#allocation2 + $0x140] sm:$0xff]
    %v583 = vld [vmem:[#allocation2 + $0x148] sm:$0xff]
    %v584 = vld [vmem:[#allocation2 + $0x150] sm:$0xff]
    %v585 = vld [vmem:[#allocation2 + $0x158] sm:$0xff]
    %v586 = vld [vmem:[#allocation2 + $0x160] sm:$0xff]
    %v587 = vld [vmem:[#allocation2 + $0x168] sm:$0xff]
    %v588 = vld [vmem:[#allocation2 + $0x170] sm:$0xff]
    %v589 = vld [vmem:[#allocation2 + $0x178] sm:$0xff]
    %v590 = vld [vmem:[#allocation2 + $0x180] sm:$0xff]
    %v591 = vld [vmem:[#allocation2 + $0x188] sm:$0xff]
    %v592 = vld [vmem:[#allocation2 + $0x190] sm:$0xff]
    %v593 = vld [vmem:[#allocation2 + $0x198] sm:$0xff]
    %v594 = vld [vmem:[#allocation2 + $0x1a0] sm:$0xff]
    %v595 = vld [vmem:[#allocation2 + $0x1a8] sm:$0xff]
    %v596 = vld [vmem:[#allocation2 + $0x1b0] sm:$0xff]
    %v597 = vld [vmem:[#allocation2 + $0x1b8] sm:$0xff]
    %v598 = vld [vmem:[#allocation2 + $0x1c0] sm:$0xff]
    %v599 = vld [vmem:[#allocation2 + $0x1c8] sm:$0xff]
    %v600 = vld [vmem:[#allocation2 + $0x1d0] sm:$0xff]
    %v601 = vld [vmem:[#allocation2 + $0x1d8] sm:$0xff]
    %v602 = vld [vmem:[#allocation2 + $0x1e0] sm:$0xff]
    %v603 = vld [vmem:[#allocation2 + $0x1e8] sm:$0xff]
    %v604 = vld [vmem:[#allocation2 + $0x1f0] sm:$0xff]
    %v605 = vld [vmem:[#allocation2 + $0x1f8] sm:$0xff]
    %606 = vmatprep.subr.mxu0 %v603
    %607 = vmatpush1.msra.mxu0 %v602
    %608 = vmatprep.subr.mxu0 %v599
    %609 = vmatpush1.msra.mxu0 %v598
    %610 = vmatprep.subr.mxu0 %v595
    %611 = vmatpush1.msra.mxu0 %v594
    %612 = vmatprep.subr.mxu0 %v591
    %613 = vmatpush1.msra.mxu0 %v590
    %614 = vmatprep.subr.mxu0 %v587
    %615 = vmatpush1.msra.mxu0 %v586
    %616 = vmatprep.subr.mxu0 %v583
    %617 = vmatpush1.msra.mxu0 %v582
    %618 = vmatprep.subr.mxu0 %v579
    %619 = vmatpush1.msra.mxu0 %v578
    %620 = vmatprep.subr.mxu0 %v575
    %621 = vmatpush1.msra.mxu0 %v574
    %622 = vmatprep.subr.mxu0 %v571
    %623 = vmatpush1.msra.mxu0 %v570
    %624 = vmatprep.subr.mxu0 %v567
    %625 = vmatpush1.msra.mxu0 %v566
    %626 = vmatprep.subr.mxu0 %v563
    %627 = vmatpush1.msra.mxu0 %v562
    %628 = vmatprep.subr.mxu0 %v559
    %629 = vmatpush1.msra.mxu0 %v558
    %630 = vmatprep.subr.mxu0 %v555
    %631 = vmatpush1.msra.mxu0 %v554
    %632 = vmatprep.subr.mxu0 %v551
    %633 = vmatpush1.msra.mxu0 %v550
    %634 = vmatprep.subr.mxu0 %v547
    %635 = vmatpush1.msra.mxu0 %v546
    %636 = vmatprep.subr.mxu0 %v543
    %637 = vmatpush1.msra.mxu0 %v542
    %638 = vmatprep.subr.mxu0 0.0
    %639 = vmatpush2.msra.mxu0 0.0
    %640 = vmatprep.subr.mxu0 0.0
    %641 = vmatpush2.msra.mxu0 0.0
    %642 = vmatprep.subr.mxu0 0.0
    %643 = vmatpush2.msra.mxu0 0.0
    %644 = vmatprep.subr.mxu0 0.0
    %645 = vmatpush2.msra.mxu0 0.0
    %646 = vmatprep.subr.mxu0 0.0
    %647 = vmatpush2.msra.mxu0 0.0
    %648 = vmatprep.subr.mxu0 0.0
    %649 = vmatpush2.msra.mxu0 0.0
    %650 = vmatprep.subr.mxu0 0.0
    %651 = vmatpush2.msra.mxu0 0.0
    %652 = vmatprep.subr.mxu0 0.0
    %653 = vmatpush2.msra.mxu0 0.0
    %654 = vmatprep.subr.mxu0 0.0
    %655 = vmatpush2.msra.mxu0 0.0
    %656 = vmatprep.subr.mxu0 0.0
    %657 = vmatpush2.msra.mxu0 0.0
    %658 = vmatprep.subr.mxu0 0.0
    %659 = vmatpush2.msra.mxu0 0.0
    %660 = vmatprep.subr.mxu0 0.0
    %661 = vmatpush2.msra.mxu0 0.0
    %662 = vmatprep.subr.mxu0 0.0
    %663 = vmatpush2.msra.mxu0 0.0
    %664 = vmatprep.subr.mxu0 0.0
    %665 = vmatpush2.msra.mxu0 0.0
    %666 = vmatprep.subr.mxu0 0.0
    %667 = vmatpush2.msra.mxu0 0.0
    %668 = vmatprep.subr.mxu0 0.0
    %669 = vmatpush2.msra.mxu0 0.0
    %670 = vmatprep.mubr.f32.mxu0 0.0
    %671 = vmatmul.mubr.f32.gmra.mxu0 %v541
    %v672 = vpop.f32.mrf.mxu0
    %v673 = vadd.f32 0.0, %v672
    %v674 = vpop.f32.mrf.mxu0
    %v675 = vadd.f32 0.0, %v674
    %676 = vdwg.mxu0
    %677 = vmatprep.subr.mxu0 %v605
    %678 = vmatpush1.msra.mxu0 %v604
    %679 = vmatprep.subr.mxu0 %v601
    %680 = vmatpush1.msra.mxu0 %v600
    %681 = vmatprep.subr.mxu0 %v597
    %682 = vmatpush1.msra.mxu0 %v596
    %683 = vmatprep.subr.mxu0 %v593
    %684 = vmatpush1.msra.mxu0 %v592
    %685 = vmatprep.subr.mxu0 %v589
    %686 = vmatpush1.msra.mxu0 %v588
    %687 = vmatprep.subr.mxu0 %v585
    %688 = vmatpush1.msra.mxu0 %v584
    %689 = vmatprep.subr.mxu0 %v581
    %690 = vmatpush1.msra.mxu0 %v580
    %691 = vmatprep.subr.mxu0 %v577
    %692 = vmatpush1.msra.mxu0 %v576
    %693 = vmatprep.subr.mxu0 %v573
    %694 = vmatpush1.msra.mxu0 %v572
    %695 = vmatprep.subr.mxu0 %v569
    %696 = vmatpush1.msra.mxu0 %v568
    %697 = vmatprep.subr.mxu0 %v565
    %698 = vmatpush1.msra.mxu0 %v564
    %699 = vmatprep.subr.mxu0 %v561
    %700 = vmatpush1.msra.mxu0 %v560
    %701 = vmatprep.subr.mxu0 %v557
    %702 = vmatpush1.msra.mxu0 %v556
    %703 = vmatprep.subr.mxu0 %v553
    %704 = vmatpush1.msra.mxu0 %v552
    %705 = vmatprep.subr.mxu0 %v549
    %706 = vmatpush1.msra.mxu0 %v548
    %707 = vmatprep.subr.mxu0 %v545
    %708 = vmatpush1.msra.mxu0 %v544
    %709 = vmatprep.subr.mxu0 0.0
    %710 = vmatpush2.msra.mxu0 0.0
    %711 = vmatprep.subr.mxu0 0.0
    %712 = vmatpush2.msra.mxu0 0.0
    %713 = vmatprep.subr.mxu0 0.0
    %714 = vmatpush2.msra.mxu0 0.0
    %715 = vmatprep.subr.mxu0 0.0
    %716 = vmatpush2.msra.mxu0 0.0
    %717 = vmatprep.subr.mxu0 0.0
    %718 = vmatpush2.msra.mxu0 0.0
    %719 = vmatprep.subr.mxu0 0.0
    %720 = vmatpush2.msra.mxu0 0.0
    %721 = vmatprep.subr.mxu0 0.0
    %722 = vmatpush2.msra.mxu0 0.0
    %723 = vmatprep.subr.mxu0 0.0
    %724 = vmatpush2.msra.mxu0 0.0
    %725 = vmatprep.subr.mxu0 0.0
    %726 = vmatpush2.msra.mxu0 0.0
    %727 = vmatprep.subr.mxu0 0.0
    %728 = vmatpush2.msra.mxu0 0.0
    %729 = vmatprep.subr.mxu0 0.0
    %730 = vmatpush2.msra.mxu0 0.0
    %731 = vmatprep.subr.mxu0 0.0
    %732 = vmatpush2.msra.mxu0 0.0
    %733 = vmatprep.subr.mxu0 0.0
    %734 = vmatpush2.msra.mxu0 0.0
    %735 = vmatprep.subr.mxu0 0.0
    %736 = vmatpush2.msra.mxu0 0.0
    %737 = vmatprep.subr.mxu0 0.0
    %738 = vmatpush2.msra.mxu0 0.0
    %739 = vmatprep.subr.mxu0 0.0
    %740 = vmatpush2.msra.mxu0 0.0
    %741 = vmatprep.mubr.f32.mxu0 0.0
    %742 = vmatmul.mubr.f32.gmra.mxu0 %v541
    %v743 = vpop.f32.mrf.mxu0
    %v744 = vadd.f32 0.0, %v743
    %v745 = vpop.f32.mrf.mxu0
    %v746 = vadd.f32 0.0, %v745
    %747 = vdwg.mxu0
    %v748 = vadd.f32 %v537, %v673
    %v749 = vadd.f32 %v538, %v675
    %v750 = vadd.f32 %v539, %v744
    %v751 = vadd.f32 %v540, %v746
    %v752 = vxor.u32 %v748, 2147483648
    %v753 = vmul.f32 %v752, 1.442695
    %v754 = vpow.pop %v753
    %v755 = vadd.f32 %v754, 1.0
    %v756 = vrcp.pop %v755
    %v757 = vmul.f32 1.0, %v756
    %v758 = vxor.u32 %v749, 2147483648
    %v759 = vmul.f32 %v758, 1.442695
    %v760 = vpow.pop %v759
    %v761 = vadd.f32 %v760, 1.0
    %v762 = vrcp.pop %v761
    %v763 = vmul.f32 1.0, %v762
    %v764 = vtanh.pop %v750
    %v765 = vxor.u32 %v751, 2147483648
    %v766 = vmul.f32 %v765, 1.442695
    %v767 = vpow.pop %v766
    %v768 = vadd.f32 %v767, 1.0
    %v769 = vrcp.pop %v768
    %v770 = vmul.f32 1.0, %v769
    %v771 = vld [vmem:[#allocation4] sm:$0xff]
    %v772 = vmul.f32 %v763, %v771
    %v773 = vmul.f32 %v757, %v764
    %v774 = vadd.f32 %v772, %v773
    %v775 = vtanh.pop %v774
    %v776 = vmul.f32 %v770, %v775
    %777 = vst [vmem:[#allocation4] sm:$0xff] %v774
    %778 = vst [vmem:[#allocation3] sm:$0xff] %v776
    %s779 = scalar_lea.vmem [#allocation9], 16
    %780 = vst [vmem:[%s779] sm:$0xff] %v776
    %s781 = scalar_lea.vmem [#allocation6], 96
    %v782 = vld [vmem:[%s781] sm:$0xff]
    %v783 = vld [vmem:[%s781 + $0x8] sm:$0xff]
    %v784 = vld [vmem:[%s781 + $0x10] sm:$0xff]
    %v785 = vld [vmem:[%s781 + $0x18] sm:$0xff]
    %v786 = vld [vmem:[#allocation3] sm:$0xff]
    %v787 = vld [vmem:[#allocation2] sm:$0xff]
    %v788 = vld [vmem:[#allocation2 + $0x8] sm:$0xff]
    %v789 = vld [vmem:[#allocation2 + $0x10] sm:$0xff]
    %v790 = vld [vmem:[#allocation2 + $0x18] sm:$0xff]
    %v791 = vld [vmem:[#allocation2 + $0x20] sm:$0xff]
    %v792 = vld [vmem:[#allocation2 + $0x28] sm:$0xff]
    %v793 = vld [vmem:[#allocation2 + $0x30] sm:$0xff]
    %v794 = vld [vmem:[#allocation2 + $0x38] sm:$0xff]
    %v795 = vld [vmem:[#allocation2 + $0x40] sm:$0xff]
    %v796 = vld [vmem:[#allocation2 + $0x48] sm:$0xff]
    %v797 = vld [vmem:[#allocation2 + $0x50] sm:$0xff]
    %v798 = vld [vmem:[#allocation2 + $0x58] sm:$0xff]
    %v799 = vld [vmem:[#allocation2 + $0x60] sm:$0xff]
    %v800 = vld [vmem:[#allocation2 + $0x68] sm:$0xff]
    %v801 = vld [vmem:[#allocation2 + $0x70] sm:$0xff]
    %v802 = vld [vmem:[#allocation2 + $0x78] sm:$0xff]
    %v803 = vld [vmem:[#allocation2 + $0x80] sm:$0xff]
    %v804 = vld [vmem:[#allocation2 + $0x88] sm:$0xff]
    %v805 = vld [vmem:[#allocation2 + $0x90] sm:$0xff]
    %v806 = vld [vmem:[#allocation2 + $0x98] sm:$0xff]
    %v807 = vld [vmem:[#allocation2 + $0xa0] sm:$0xff]
    %v808 = vld [vmem:[#allocation2 + $0xa8] sm:$0xff]
    %v809 = vld [vmem:[#allocation2 + $0xb0] sm:$0xff]
    %v810 = vld [vmem:[#allocation2 + $0xb8] sm:$0xff]
    %v811 = vld [vmem:[#allocation2 + $0xc0] sm:$0xff]
    %v812 = vld [vmem:[#allocation2 + $0xc8] sm:$0xff]
    %v813 = vld [vmem:[#allocation2 + $0xd0] sm:$0xff]
    %v814 = vld [vmem:[#allocation2 + $0xd8] sm:$0xff]
    %v815 = vld [vmem:[#allocation2 + $0xe0] sm:$0xff]
    %v816 = vld [vmem:[#allocation2 + $0xe8] sm:$0xff]
    %v817 = vld [vmem:[#allocation2 + $0xf0] sm:$0xff]
    %v818 = vld [vmem:[#allocation2 + $0xf8] sm:$0xff]
    %v819 = vld [vmem:[#allocation2 + $0x100] sm:$0xff]
    %v820 = vld [vmem:[#allocation2 + $0x108] sm:$0xff]
    %v821 = vld [vmem:[#allocation2 + $0x110] sm:$0xff]
    %v822 = vld [vmem:[#allocation2 + $0x118] sm:$0xff]
    %v823 = vld [vmem:[#allocation2 + $0x120] sm:$0xff]
    %v824 = vld [vmem:[#allocation2 + $0x128] sm:$0xff]
    %v825 = vld [vmem:[#allocation2 + $0x130] sm:$0xff]
    %v826 = vld [vmem:[#allocation2 + $0x138] sm:$0xff]
    %v827 = vld [vmem:[#allocation2 + $0x140] sm:$0xff]
    %v828 = vld [vmem:[#allocation2 + $0x148] sm:$0xff]
    %v829 = vld [vmem:[#allocation2 + $0x150] sm:$0xff]
    %v830 = vld [vmem:[#allocation2 + $0x158] sm:$0xff]
    %v831 = vld [vmem:[#allocation2 + $0x160] sm:$0xff]
    %v832 = vld [vmem:[#allocation2 + $0x168] sm:$0xff]
    %v833 = vld [vmem:[#allocation2 + $0x170] sm:$0xff]
    %v834 = vld [vmem:[#allocation2 + $0x178] sm:$0xff]
    %v835 = vld [vmem:[#allocation2 + $0x180] sm:$0xff]
    %v836 = vld [vmem:[#allocation2 + $0x188] sm:$0xff]
    %v837 = vld [vmem:[#allocation2 + $0x190] sm:$0xff]
    %v838 = vld [vmem:[#allocation2 + $0x198] sm:$0xff]
    %v839 = vld [vmem:[#allocation2 + $0x1a0] sm:$0xff]
    %v840 = vld [vmem:[#allocation2 + $0x1a8] sm:$0xff]
    %v841 = vld [vmem:[#allocation2 + $0x1b0] sm:$0xff]
    %v842 = vld [vmem:[#allocation2 + $0x1b8] sm:$0xff]
    %v843 = vld [vmem:[#allocation2 + $0x1c0] sm:$0xff]
    %v844 = vld [vmem:[#allocation2 + $0x1c8] sm:$0xff]
    %v845 = vld [vmem:[#allocation2 + $0x1d0] sm:$0xff]
    %v846 = vld [vmem:[#allocation2 + $0x1d8] sm:$0xff]
    %v847 = vld [vmem:[#allocation2 + $0x1e0] sm:$0xff]
    %v848 = vld [vmem:[#allocation2 + $0x1e8] sm:$0xff]
    %v849 = vld [vmem:[#allocation2 + $0x1f0] sm:$0xff]
    %v850 = vld [vmem:[#allocation2 + $0x1f8] sm:$0xff]
    %851 = vmatprep.subr.mxu0 %v848
    %852 = vmatpush1.msra.mxu0 %v847
    %853 = vmatprep.subr.mxu0 %v844
    %854 = vmatpush1.msra.mxu0 %v843
    %855 = vmatprep.subr.mxu0 %v840
    %856 = vmatpush1.msra.mxu0 %v839
    %857 = vmatprep.subr.mxu0 %v836
    %858 = vmatpush1.msra.mxu0 %v835
    %859 = vmatprep.subr.mxu0 %v832
    %860 = vmatpush1.msra.mxu0 %v831
    %861 = vmatprep.subr.mxu0 %v828
    %862 = vmatpush1.msra.mxu0 %v827
    %863 = vmatprep.subr.mxu0 %v824
    %864 = vmatpush1.msra.mxu0 %v823
    %865 = vmatprep.subr.mxu0 %v820
    %866 = vmatpush1.msra.mxu0 %v819
    %867 = vmatprep.subr.mxu0 %v816
    %868 = vmatpush1.msra.mxu0 %v815
    %869 = vmatprep.subr.mxu0 %v812
    %870 = vmatpush1.msra.mxu0 %v811
    %871 = vmatprep.subr.mxu0 %v808
    %872 = vmatpush1.msra.mxu0 %v807
    %873 = vmatprep.subr.mxu0 %v804
    %874 = vmatpush1.msra.mxu0 %v803
    %875 = vmatprep.subr.mxu0 %v800
    %876 = vmatpush1.msra.mxu0 %v799
    %877 = vmatprep.subr.mxu0 %v796
    %878 = vmatpush1.msra.mxu0 %v795
    %879 = vmatprep.subr.mxu0 %v792
    %880 = vmatpush1.msra.mxu0 %v791
    %881 = vmatprep.subr.mxu0 %v788
    %882 = vmatpush1.msra.mxu0 %v787
    %883 = vmatprep.subr.mxu0 0.0
    %884 = vmatpush2.msra.mxu0 0.0
    %885 = vmatprep.subr.mxu0 0.0
    %886 = vmatpush2.msra.mxu0 0.0
    %887 = vmatprep.subr.mxu0 0.0
    %888 = vmatpush2.msra.mxu0 0.0
    %889 = vmatprep.subr.mxu0 0.0
    %890 = vmatpush2.msra.mxu0 0.0
    %891 = vmatprep.subr.mxu0 0.0
    %892 = vmatpush2.msra.mxu0 0.0
    %893 = vmatprep.subr.mxu0 0.0
    %894 = vmatpush2.msra.mxu0 0.0
    %895 = vmatprep.subr.mxu0 0.0
    %896 = vmatpush2.msra.mxu0 0.0
    %897 = vmatprep.subr.mxu0 0.0
    %898 = vmatpush2.msra.mxu0 0.0
    %899 = vmatprep.subr.mxu0 0.0
    %900 = vmatpush2.msra.mxu0 0.0
    %901 = vmatprep.subr.mxu0 0.0
    %902 = vmatpush2.msra.mxu0 0.0
    %903 = vmatprep.subr.mxu0 0.0
    %904 = vmatpush2.msra.mxu0 0.0
    %905 = vmatprep.subr.mxu0 0.0
    %906 = vmatpush2.msra.mxu0 0.0
    %907 = vmatprep.subr.mxu0 0.0
    %908 = vmatpush2.msra.mxu0 0.0
    %909 = vmatprep.subr.mxu0 0.0
    %910 = vmatpush2.msra.mxu0 0.0
    %911 = vmatprep.subr.mxu0 0.0
    %912 = vmatpush2.msra.mxu0 0.0
    %913 = vmatprep.subr.mxu0 0.0
    %914 = vmatpush2.msra.mxu0 0.0
    %915 = vmatprep.mubr.f32.mxu0 0.0
    %916 = vmatmul.mubr.f32.gmra.mxu0 %v786
    %v917 = vpop.f32.mrf.mxu0
    %v918 = vadd.f32 0.0, %v917
    %v919 = vpop.f32.mrf.mxu0
    %v920 = vadd.f32 0.0, %v919
    %921 = vdwg.mxu0
    %922 = vmatprep.subr.mxu0 %v850
    %923 = vmatpush1.msra.mxu0 %v849
    %924 = vmatprep.subr.mxu0 %v846
    %925 = vmatpush1.msra.mxu0 %v845
    %926 = vmatprep.subr.mxu0 %v842
    %927 = vmatpush1.msra.mxu0 %v841
    %928 = vmatprep.subr.mxu0 %v838
    %929 = vmatpush1.msra.mxu0 %v837
    %930 = vmatprep.subr.mxu0 %v834
    %931 = vmatpush1.msra.mxu0 %v833
    %932 = vmatprep.subr.mxu0 %v830
    %933 = vmatpush1.msra.mxu0 %v829
    %934 = vmatprep.subr.mxu0 %v826
    %935 = vmatpush1.msra.mxu0 %v825
    %936 = vmatprep.subr.mxu0 %v822
    %937 = vmatpush1.msra.mxu0 %v821
    %938 = vmatprep.subr.mxu0 %v818
    %939 = vmatpush1.msra.mxu0 %v817
    %940 = vmatprep.subr.mxu0 %v814
    %941 = vmatpush1.msra.mxu0 %v813
    %942 = vmatprep.subr.mxu0 %v810
    %943 = vmatpush1.msra.mxu0 %v809
    %944 = vmatprep.subr.mxu0 %v806
    %945 = vmatpush1.msra.mxu0 %v805
    %946 = vmatprep.subr.mxu0 %v802
    %947 = vmatpush1.msra.mxu0 %v801
    %948 = vmatprep.subr.mxu0 %v798
    %949 = vmatpush1.msra.mxu0 %v797
    %950 = vmatprep.subr.mxu0 %v794
    %951 = vmatpush1.msra.mxu0 %v793
    %952 = vmatprep.subr.mxu0 %v790
    %953 = vmatpush1.msra.mxu0 %v789
    %954 = vmatprep.subr.mxu0 0.0
    %955 = vmatpush2.msra.mxu0 0.0
    %956 = vmatprep.subr.mxu0 0.0
    %957 = vmatpush2.msra.mxu0 0.0
    %958 = vmatprep.subr.mxu0 0.0
    %959 = vmatpush2.msra.mxu0 0.0
    %960 = vmatprep.subr.mxu0 0.0
    %961 = vmatpush2.msra.mxu0 0.0
    %962 = vmatprep.subr.mxu0 0.0
    %963 = vmatpush2.msra.mxu0 0.0
    %964 = vmatprep.subr.mxu0 0.0
    %965 = vmatpush2.msra.mxu0 0.0
    %966 = vmatprep.subr.mxu0 0.0
    %967 = vmatpush2.msra.mxu0 0.0
    %968 = vmatprep.subr.mxu0 0.0
    %969 = vmatpush2.msra.mxu0 0.0
    %970 = vmatprep.subr.mxu0 0.0
    %971 = vmatpush2.msra.mxu0 0.0
    %972 = vmatprep.subr.mxu0 0.0
    %973 = vmatpush2.msra.mxu0 0.0
    %974 = vmatprep.subr.mxu0 0.0
    %975 = vmatpush2.msra.mxu0 0.0
    %976 = vmatprep.subr.mxu0 0.0
    %977 = vmatpush2.msra.mxu0 0.0
    %978 = vmatprep.subr.mxu0 0.0
    %979 = vmatpush2.msra.mxu0 0.0
    %980 = vmatprep.subr.mxu0 0.0
    %981 = vmatpush2.msra.mxu0 0.0
    %982 = vmatprep.subr.mxu0 0.0
    %983 = vmatpush2.msra.mxu0 0.0
    %984 = vmatprep.subr.mxu0 0.0
    %985 = vmatpush2.msra.mxu0 0.0
    %986 = vmatprep.mubr.f32.mxu0 0.0
    %987 = vmatmul.mubr.f32.gmra.mxu0 %v786
    %v988 = vpop.f32.mrf.mxu0
    %v989 = vadd.f32 0.0, %v988
    %v990 = vpop.f32.mrf.mxu0
    %v991 = vadd.f32 0.0, %v990
    %992 = vdwg.mxu0
    %v993 = vadd.f32 %v782, %v918
    %v994 = vadd.f32 %v783, %v920
    %v995 = vadd.f32 %v784, %v989
    %v996 = vadd.f32 %v785, %v991
    %v997 = vxor.u32 %v993, 2147483648
    %v998 = vmul.f32 %v997, 1.442695
    %v999 = vpow.pop %v998
    %v1000 = vadd.f32 %v999, 1.0
    %v1001 = vrcp.pop %v1000
    %v1002 = vmul.f32 1.0, %v1001
    %v1003 = vxor.u32 %v994, 2147483648
    %v1004 = vmul.f32 %v1003, 1.442695
    %v1005 = vpow.pop %v1004
    %v1006 = vadd.f32 %v1005, 1.0
    %v1007 = vrcp.pop %v1006
    %v1008 = vmul.f32 1.0, %v1007
    %v1009 = vtanh.pop %v995
    %v1010 = vxor.u32 %v996, 2147483648
    %v1011 = vmul.f32 %v1010, 1.442695
    %v1012 = vpow.pop %v1011
    %v1013 = vadd.f32 %v1012, 1.0
    %v1014 = vrcp.pop %v1013
    %v1015 = vmul.f32 1.0, %v1014
    %v1016 = vld [vmem:[#allocation4] sm:$0xff]
    %v1017 = vmul.f32 %v1008, %v1016
    %v1018 = vmul.f32 %v1002, %v1009
    %v1019 = vadd.f32 %v1017, %v1018
    %v1020 = vtanh.pop %v1019
    %v1021 = vmul.f32 %v1015, %v1020
    %1022 = vst [vmem:[#allocation4] sm:$0xff] %v1019
    %1023 = vst [vmem:[#allocation3] sm:$0xff] %v1021
    %s1024 = scalar_lea.vmem [#allocation9], 24
    %1025 = vst [vmem:[%s1024] sm:$0xff] %v1021
    %s1026 = scalar_lea.vmem [#allocation6], 128
    %v1027 = vld [vmem:[%s1026] sm:$0xff]
    %v1028 = vld [vmem:[%s1026 + $0x8] sm:$0xff]
    %v1029 = vld [vmem:[%s1026 + $0x10] sm:$0xff]
    %v1030 = vld [vmem:[%s1026 + $0x18] sm:$0xff]
    %v1031 = vld [vmem:[#allocation3] sm:$0xff]
    %v1032 = vld [vmem:[#allocation2] sm:$0xff]
    %v1033 = vld [vmem:[#allocation2 + $0x8] sm:$0xff]
    %v1034 = vld [vmem:[#allocation2 + $0x10] sm:$0xff]
    %v1035 = vld [vmem:[#allocation2 + $0x18] sm:$0xff]
    %v1036 = vld [vmem:[#allocation2 + $0x20] sm:$0xff]
    %v1037 = vld [vmem:[#allocation2 + $0x28] sm:$0xff]
    %v1038 = vld [vmem:[#allocation2 + $0x30] sm:$0xff]
    %v1039 = vld [vmem:[#allocation2 + $0x38] sm:$0xff]
    %v1040 = vld [vmem:[#allocation2 + $0x40] sm:$0xff]
    %v1041 = vld [vmem:[#allocation2 + $0x48] sm:$0xff]
    %v1042 = vld [vmem:[#allocation2 + $0x50] sm:$0xff]
    %v1043 = vld [vmem:[#allocation2 + $0x58] sm:$0xff]
    %v1044 = vld [vmem:[#allocation2 + $0x60] sm:$0xff]
    %v1045 = vld [vmem:[#allocation2 + $0x68] sm:$0xff]
    %v1046 = vld [vmem:[#allocation2 + $0x70] sm:$0xff]
    %v1047 = vld [vmem:[#allocation2 + $0x78] sm:$0xff]
    %v1048 = vld [vmem:[#allocation2 + $0x80] sm:$0xff]
    %v1049 = vld [vmem:[#allocation2 + $0x88] sm:$0xff]
    %v1050 = vld [vmem:[#allocation2 + $0x90] sm:$0xff]
    %v1051 = vld [vmem:[#allocation2 + $0x98] sm:$0xff]
    %v1052 = vld [vmem:[#allocation2 + $0xa0] sm:$0xff]
    %v1053 = vld [vmem:[#allocation2 + $0xa8] sm:$0xff]
    %v1054 = vld [vmem:[#allocation2 + $0xb0] sm:$0xff]
    %v1055 = vld [vmem:[#allocation2 + $0xb8] sm:$0xff]
    %v1056 = vld [vmem:[#allocation2 + $0xc0] sm:$0xff]
    %v1057 = vld [vmem:[#allocation2 + $0xc8] sm:$0xff]
    %v1058 = vld [vmem:[#allocation2 + $0xd0] sm:$0xff]
    %v1059 = vld [vmem:[#allocation2 + $0xd8] sm:$0xff]
    %v1060 = vld [vmem:[#allocation2 + $0xe0] sm:$0xff]
    %v1061 = vld [vmem:[#allocation2 + $0xe8] sm:$0xff]
    %v1062 = vld [vmem:[#allocation2 + $0xf0] sm:$0xff]
    %v1063 = vld [vmem:[#allocation2 + $0xf8] sm:$0xff]
    %v1064 = vld [vmem:[#allocation2 + $0x100] sm:$0xff]
    %v1065 = vld [vmem:[#allocation2 + $0x108] sm:$0xff]
    %v1066 = vld [vmem:[#allocation2 + $0x110] sm:$0xff]
    %v1067 = vld [vmem:[#allocation2 + $0x118] sm:$0xff]
    %v1068 = vld [vmem:[#allocation2 + $0x120] sm:$0xff]
    %v1069 = vld [vmem:[#allocation2 + $0x128] sm:$0xff]
    %v1070 = vld [vmem:[#allocation2 + $0x130] sm:$0xff]
    %v1071 = vld [vmem:[#allocation2 + $0x138] sm:$0xff]
    %v1072 = vld [vmem:[#allocation2 + $0x140] sm:$0xff]
    %v1073 = vld [vmem:[#allocation2 + $0x148] sm:$0xff]
    %v1074 = vld [vmem:[#allocation2 + $0x150] sm:$0xff]
    %v1075 = vld [vmem:[#allocation2 + $0x158] sm:$0xff]
    %v1076 = vld [vmem:[#allocation2 + $0x160] sm:$0xff]
    %v1077 = vld [vmem:[#allocation2 + $0x168] sm:$0xff]
    %v1078 = vld [vmem:[#allocation2 + $0x170] sm:$0xff]
    %v1079 = vld [vmem:[#allocation2 + $0x178] sm:$0xff]
    %v1080 = vld [vmem:[#allocation2 + $0x180] sm:$0xff]
    %v1081 = vld [vmem:[#allocation2 + $0x188] sm:$0xff]
    %v1082 = vld [vmem:[#allocation2 + $0x190] sm:$0xff]
    %v1083 = vld [vmem:[#allocation2 + $0x198] sm:$0xff]
    %v1084 = vld [vmem:[#allocation2 + $0x1a0] sm:$0xff]
    %v1085 = vld [vmem:[#allocation2 + $0x1a8] sm:$0xff]
    %v1086 = vld [vmem:[#allocation2 + $0x1b0] sm:$0xff]
    %v1087 = vld [vmem:[#allocation2 + $0x1b8] sm:$0xff]
    %v1088 = vld [vmem:[#allocation2 + $0x1c0] sm:$0xff]
    %v1089 = vld [vmem:[#allocation2 + $0x1c8] sm:$0xff]
    %v1090 = vld [vmem:[#allocation2 + $0x1d0] sm:$0xff]
    %v1091 = vld [vmem:[#allocation2 + $0x1d8] sm:$0xff]
    %v1092 = vld [vmem:[#allocation2 + $0x1e0] sm:$0xff]
    %v1093 = vld [vmem:[#allocation2 + $0x1e8] sm:$0xff]
    %v1094 = vld [vmem:[#allocation2 + $0x1f0] sm:$0xff]
    %v1095 = vld [vmem:[#allocation2 + $0x1f8] sm:$0xff]
    %1096 = vmatprep.subr.mxu0 %v1093
    %1097 = vmatpush1.msra.mxu0 %v1092
    %1098 = vmatprep.subr.mxu0 %v1089
    %1099 = vmatpush1.msra.mxu0 %v1088
    %1100 = vmatprep.subr.mxu0 %v1085
    %1101 = vmatpush1.msra.mxu0 %v1084
    %1102 = vmatprep.subr.mxu0 %v1081
    %1103 = vmatpush1.msra.mxu0 %v1080
    %1104 = vmatprep.subr.mxu0 %v1077
    %1105 = vmatpush1.msra.mxu0 %v1076
    %1106 = vmatprep.subr.mxu0 %v1073
    %1107 = vmatpush1.msra.mxu0 %v1072
    %1108 = vmatprep.subr.mxu0 %v1069
    %1109 = vmatpush1.msra.mxu0 %v1068
    %1110 = vmatprep.subr.mxu0 %v1065
    %1111 = vmatpush1.msra.mxu0 %v1064
    %1112 = vmatprep.subr.mxu0 %v1061
    %1113 = vmatpush1.msra.mxu0 %v1060
    %1114 = vmatprep.subr.mxu0 %v1057
    %1115 = vmatpush1.msra.mxu0 %v1056
    %1116 = vmatprep.subr.mxu0 %v1053
    %1117 = vmatpush1.msra.mxu0 %v1052
    %1118 = vmatprep.subr.mxu0 %v1049
    %1119 = vmatpush1.msra.mxu0 %v1048
    %1120 = vmatprep.subr.mxu0 %v1045
    %1121 = vmatpush1.msra.mxu0 %v1044
    %1122 = vmatprep.subr.mxu0 %v1041
    %1123 = vmatpush1.msra.mxu0 %v1040
    %1124 = vmatprep.subr.mxu0 %v1037
    %1125 = vmatpush1.msra.mxu0 %v1036
    %1126 = vmatprep.subr.mxu0 %v1033
    %1127 = vmatpush1.msra.mxu0 %v1032
    %1128 = vmatprep.subr.mxu0 0.0
    %1129 = vmatpush2.msra.mxu0 0.0
    %1130 = vmatprep.subr.mxu0 0.0
    %1131 = vmatpush2.msra.mxu0 0.0
    %1132 = vmatprep.subr.mxu0 0.0
    %1133 = vmatpush2.msra.mxu0 0.0
    %1134 = vmatprep.subr.mxu0 0.0
    %1135 = vmatpush2.msra.mxu0 0.0
    %1136 = vmatprep.subr.mxu0 0.0
    %1137 = vmatpush2.msra.mxu0 0.0
    %1138 = vmatprep.subr.mxu0 0.0
    %1139 = vmatpush2.msra.mxu0 0.0
    %1140 = vmatprep.subr.mxu0 0.0
    %1141 = vmatpush2.msra.mxu0 0.0
    %1142 = vmatprep.subr.mxu0 0.0
    %1143 = vmatpush2.msra.mxu0 0.0
    %1144 = vmatprep.subr.mxu0 0.0
    %1145 = vmatpush2.msra.mxu0 0.0
    %1146 = vmatprep.subr.mxu0 0.0
    %1147 = vmatpush2.msra.mxu0 0.0
    %1148 = vmatprep.subr.mxu0 0.0
    %1149 = vmatpush2.msra.mxu0 0.0
    %1150 = vmatprep.subr.mxu0 0.0
    %1151 = vmatpush2.msra.mxu0 0.0
    %1152 = vmatprep.subr.mxu0 0.0
    %1153 = vmatpush2.msra.mxu0 0.0
    %1154 = vmatprep.subr.mxu0 0.0
    %1155 = vmatpush2.msra.mxu0 0.0
    %1156 = vmatprep.subr.mxu0 0.0
    %1157 = vmatpush2.msra.mxu0 0.0
    %1158 = vmatprep.subr.mxu0 0.0
    %1159 = vmatpush2.msra.mxu0 0.0
    %1160 = vmatprep.mubr.f32.mxu0 0.0
    %1161 = vmatmul.mubr.f32.gmra.mxu0 %v1031
    %v1162 = vpop.f32.mrf.mxu0
    %v1163 = vadd.f32 0.0, %v1162
    %v1164 = vpop.f32.mrf.mxu0
    %v1165 = vadd.f32 0.0, %v1164
    %1166 = vdwg.mxu0
    %1167 = vmatprep.subr.mxu0 %v1095
    %1168 = vmatpush1.msra.mxu0 %v1094
    %1169 = vmatprep.subr.mxu0 %v1091
    %1170 = vmatpush1.msra.mxu0 %v1090
    %1171 = vmatprep.subr.mxu0 %v1087
    %1172 = vmatpush1.msra.mxu0 %v1086
    %1173 = vmatprep.subr.mxu0 %v1083
    %1174 = vmatpush1.msra.mxu0 %v1082
    %1175 = vmatprep.subr.mxu0 %v1079
    %1176 = vmatpush1.msra.mxu0 %v1078
    %1177 = vmatprep.subr.mxu0 %v1075
    %1178 = vmatpush1.msra.mxu0 %v1074
    %1179 = vmatprep.subr.mxu0 %v1071
    %1180 = vmatpush1.msra.mxu0 %v1070
    %1181 = vmatprep.subr.mxu0 %v1067
    %1182 = vmatpush1.msra.mxu0 %v1066
    %1183 = vmatprep.subr.mxu0 %v1063
    %1184 = vmatpush1.msra.mxu0 %v1062
    %1185 = vmatprep.subr.mxu0 %v1059
    %1186 = vmatpush1.msra.mxu0 %v1058
    %1187 = vmatprep.subr.mxu0 %v1055
    %1188 = vmatpush1.msra.mxu0 %v1054
    %1189 = vmatprep.subr.mxu0 %v1051
    %1190 = vmatpush1.msra.mxu0 %v1050
    %1191 = vmatprep.subr.mxu0 %v1047
    %1192 = vmatpush1.msra.mxu0 %v1046
    %1193 = vmatprep.subr.mxu0 %v1043
    %1194 = vmatpush1.msra.mxu0 %v1042
    %1195 = vmatprep.subr.mxu0 %v1039
    %1196 = vmatpush1.msra.mxu0 %v1038
    %1197 = vmatprep.subr.mxu0 %v1035
    %1198 = vmatpush1.msra.mxu0 %v1034
    %1199 = vmatprep.subr.mxu0 0.0
    %1200 = vmatpush2.msra.mxu0 0.0
    %1201 = vmatprep.subr.mxu0 0.0
    %1202 = vmatpush2.msra.mxu0 0.0
    %1203 = vmatprep.subr.mxu0 0.0
    %1204 = vmatpush2.msra.mxu0 0.0
    %1205 = vmatprep.subr.mxu0 0.0
    %1206 = vmatpush2.msra.mxu0 0.0
    %1207 = vmatprep.subr.mxu0 0.0
    %1208 = vmatpush2.msra.mxu0 0.0
    %1209 = vmatprep.subr.mxu0 0.0
    %1210 = vmatpush2.msra.mxu0 0.0
    %1211 = vmatprep.subr.mxu0 0.0
    %1212 = vmatpush2.msra.mxu0 0.0
    %1213 = vmatprep.subr.mxu0 0.0
    %1214 = vmatpush2.msra.mxu0 0.0
    %1215 = vmatprep.subr.mxu0 0.0
    %1216 = vmatpush2.msra.mxu0 0.0
    %1217 = vmatprep.subr.mxu0 0.0
    %1218 = vmatpush2.msra.mxu0 0.0
    %1219 = vmatprep.subr.mxu0 0.0
    %1220 = vmatpush2.msra.mxu0 0.0
    %1221 = vmatprep.subr.mxu0 0.0
    %1222 = vmatpush2.msra.mxu0 0.0
    %1223 = vmatprep.subr.mxu0 0.0
    %1224 = vmatpush2.msra.mxu0 0.0
    %1225 = vmatprep.subr.mxu0 0.0
    %1226 = vmatpush2.msra.mxu0 0.0
    %1227 = vmatprep.subr.mxu0 0.0
    %1228 = vmatpush2.msra.mxu0 0.0
    %1229 = vmatprep.subr.mxu0 0.0
    %1230 = vmatpush2.msra.mxu0 0.0
    %1231 = vmatprep.mubr.f32.mxu0 0.0
    %1232 = vmatmul.mubr.f32.gmra.mxu0 %v1031
    %v1233 = vpop.f32.mrf.mxu0
    %v1234 = vadd.f32 0.0, %v1233
    %v1235 = vpop.f32.mrf.mxu0
    %v1236 = vadd.f32 0.0, %v1235
    %1237 = vdwg.mxu0
    %v1238 = vadd.f32 %v1027, %v1163
    %v1239 = vadd.f32 %v1028, %v1165
    %v1240 = vadd.f32 %v1029, %v1234
    %v1241 = vadd.f32 %v1030, %v1236
    %v1242 = vxor.u32 %v1238, 2147483648
    %v1243 = vmul.f32 %v1242, 1.442695
    %v1244 = vpow.pop %v1243
    %v1245 = vadd.f32 %v1244, 1.0
    %v1246 = vrcp.pop %v1245
    %v1247 = vmul.f32 1.0, %v1246
    %v1248 = vxor.u32 %v1239, 2147483648
    %v1249 = vmul.f32 %v1248, 1.442695
    %v1250 = vpow.pop %v1249
    %v1251 = vadd.f32 %v1250, 1.0
    %v1252 = vrcp.pop %v1251
    %v1253 = vmul.f32 1.0, %v1252
    %v1254 = vtanh.pop %v1240
    %v1255 = vxor.u32 %v1241, 2147483648
    %v1256 = vmul.f32 %v1255, 1.442695
    %v1257 = vpow.pop %v1256
    %v1258 = vadd.f32 %v1257, 1.0
    %v1259 = vrcp.pop %v1258
    %v1260 = vmul.f32 1.0, %v1259
    %v1261 = vld [vmem:[#allocation4] sm:$0xff]
    %v1262 = vmul.f32 %v1253, %v1261
    %v1263 = vmul.f32 %v1247, %v1254
    %v1264 = vadd.f32 %v1262, %v1263
    %v1265 = vtanh.pop %v1264
    %v1266 = vmul.f32 %v1260, %v1265
    %1267 = vst [vmem:[#allocation4] sm:$0xff] %v1264
    %1268 = vst [vmem:[#allocation3] sm:$0xff] %v1266
    %s1269 = scalar_lea.vmem [#allocation9], 32
    %1270 = vst [vmem:[%s1269] sm:$0xff] %v1266
    %s1271 = scalar_lea.vmem [#allocation6], 160
    %v1272 = vld [vmem:[%s1271] sm:$0xff]
    %v1273 = vld [vmem:[%s1271 + $0x8] sm:$0xff]
    %v1274 = vld [vmem:[%s1271 + $0x10] sm:$0xff]
    %v1275 = vld [vmem:[%s1271 + $0x18] sm:$0xff]
    %v1276 = vld [vmem:[#allocation3] sm:$0xff]
    %v1277 = vld [vmem:[#allocation2] sm:$0xff]
    %v1278 = vld [vmem:[#allocation2 + $0x8] sm:$0xff]
    %v1279 = vld [vmem:[#allocation2 + $0x10] sm:$0xff]
    %v1280 = vld [vmem:[#allocation2 + $0x18] sm:$0xff]
    %v1281 = vld [vmem:[#allocation2 + $0x20] sm:$0xff]
    %v1282 = vld [vmem:[#allocation2 + $0x28] sm:$0xff]
    %v1283 = vld [vmem:[#allocation2 + $0x30] sm:$0xff]
    %v1284 = vld [vmem:[#allocation2 + $0x38] sm:$0xff]
    %v1285 = vld [vmem:[#allocation2 + $0x40] sm:$0xff]
    %v1286 = vld [vmem:[#allocation2 + $0x48] sm:$0xff]
    %v1287 = vld [vmem:[#allocation2 + $0x50] sm:$0xff]
    %v1288 = vld [vmem:[#allocation2 + $0x58] sm:$0xff]
    %v1289 = vld [vmem:[#allocation2 + $0x60] sm:$0xff]
    %v1290 = vld [vmem:[#allocation2 + $0x68] sm:$0xff]
    %v1291 = vld [vmem:[#allocation2 + $0x70] sm:$0xff]
    %v1292 = vld [vmem:[#allocation2 + $0x78] sm:$0xff]
    %v1293 = vld [vmem:[#allocation2 + $0x80] sm:$0xff]
    %v1294 = vld [vmem:[#allocation2 + $0x88] sm:$0xff]
    %v1295 = vld [vmem:[#allocation2 + $0x90] sm:$0xff]
    %v1296 = vld [vmem:[#allocation2 + $0x98] sm:$0xff]
    %v1297 = vld [vmem:[#allocation2 + $0xa0] sm:$0xff]
    %v1298 = vld [vmem:[#allocation2 + $0xa8] sm:$0xff]
    %v1299 = vld [vmem:[#allocation2 + $0xb0] sm:$0xff]
    %v1300 = vld [vmem:[#allocation2 + $0xb8] sm:$0xff]
    %v1301 = vld [vmem:[#allocation2 + $0xc0] sm:$0xff]
    %v1302 = vld [vmem:[#allocation2 + $0xc8] sm:$0xff]
    %v1303 = vld [vmem:[#allocation2 + $0xd0] sm:$0xff]
    %v1304 = vld [vmem:[#allocation2 + $0xd8] sm:$0xff]
    %v1305 = vld [vmem:[#allocation2 + $0xe0] sm:$0xff]
    %v1306 = vld [vmem:[#allocation2 + $0xe8] sm:$0xff]
    %v1307 = vld [vmem:[#allocation2 + $0xf0] sm:$0xff]
    %v1308 = vld [vmem:[#allocation2 + $0xf8] sm:$0xff]
    %v1309 = vld [vmem:[#allocation2 + $0x100] sm:$0xff]
    %v1310 = vld [vmem:[#allocation2 + $0x108] sm:$0xff]
    %v1311 = vld [vmem:[#allocation2 + $0x110] sm:$0xff]
    %v1312 = vld [vmem:[#allocation2 + $0x118] sm:$0xff]
    %v1313 = vld [vmem:[#allocation2 + $0x120] sm:$0xff]
    %v1314 = vld [vmem:[#allocation2 + $0x128] sm:$0xff]
    %v1315 = vld [vmem:[#allocation2 + $0x130] sm:$0xff]
    %v1316 = vld [vmem:[#allocation2 + $0x138] sm:$0xff]
    %v1317 = vld [vmem:[#allocation2 + $0x140] sm:$0xff]
    %v1318 = vld [vmem:[#allocation2 + $0x148] sm:$0xff]
    %v1319 = vld [vmem:[#allocation2 + $0x150] sm:$0xff]
    %v1320 = vld [vmem:[#allocation2 + $0x158] sm:$0xff]
    %v1321 = vld [vmem:[#allocation2 + $0x160] sm:$0xff]
    %v1322 = vld [vmem:[#allocation2 + $0x168] sm:$0xff]
    %v1323 = vld [vmem:[#allocation2 + $0x170] sm:$0xff]
    %v1324 = vld [vmem:[#allocation2 + $0x178] sm:$0xff]
    %v1325 = vld [vmem:[#allocation2 + $0x180] sm:$0xff]
    %v1326 = vld [vmem:[#allocation2 + $0x188] sm:$0xff]
    %v1327 = vld [vmem:[#allocation2 + $0x190] sm:$0xff]
    %v1328 = vld [vmem:[#allocation2 + $0x198] sm:$0xff]
    %v1329 = vld [vmem:[#allocation2 + $0x1a0] sm:$0xff]
    %v1330 = vld [vmem:[#allocation2 + $0x1a8] sm:$0xff]
    %v1331 = vld [vmem:[#allocation2 + $0x1b0] sm:$0xff]
    %v1332 = vld [vmem:[#allocation2 + $0x1b8] sm:$0xff]
    %v1333 = vld [vmem:[#allocation2 + $0x1c0] sm:$0xff]
    %v1334 = vld [vmem:[#allocation2 + $0x1c8] sm:$0xff]
    %v1335 = vld [vmem:[#allocation2 + $0x1d0] sm:$0xff]
    %v1336 = vld [vmem:[#allocation2 + $0x1d8] sm:$0xff]
    %v1337 = vld [vmem:[#allocation2 + $0x1e0] sm:$0xff]
    %v1338 = vld [vmem:[#allocation2 + $0x1e8] sm:$0xff]
    %v1339 = vld [vmem:[#allocation2 + $0x1f0] sm:$0xff]
    %v1340 = vld [vmem:[#allocation2 + $0x1f8] sm:$0xff]
    %1341 = vmatprep.subr.mxu0 %v1338
    %1342 = vmatpush1.msra.mxu0 %v1337
    %1343 = vmatprep.subr.mxu0 %v1334
    %1344 = vmatpush1.msra.mxu0 %v1333
    %1345 = vmatprep.subr.mxu0 %v1330
    %1346 = vmatpush1.msra.mxu0 %v1329
    %1347 = vmatprep.subr.mxu0 %v1326
    %1348 = vmatpush1.msra.mxu0 %v1325
    %1349 = vmatprep.subr.mxu0 %v1322
    %1350 = vmatpush1.msra.mxu0 %v1321
    %1351 = vmatprep.subr.mxu0 %v1318
    %1352 = vmatpush1.msra.mxu0 %v1317
    %1353 = vmatprep.subr.mxu0 %v1314
    %1354 = vmatpush1.msra.mxu0 %v1313
    %1355 = vmatprep.subr.mxu0 %v1310
    %1356 = vmatpush1.msra.mxu0 %v1309
    %1357 = vmatprep.subr.mxu0 %v1306
    %1358 = vmatpush1.msra.mxu0 %v1305
    %1359 = vmatprep.subr.mxu0 %v1302
    %1360 = vmatpush1.msra.mxu0 %v1301
    %1361 = vmatprep.subr.mxu0 %v1298
    %1362 = vmatpush1.msra.mxu0 %v1297
    %1363 = vmatprep.subr.mxu0 %v1294
    %1364 = vmatpush1.msra.mxu0 %v1293
    %1365 = vmatprep.subr.mxu0 %v1290
    %1366 = vmatpush1.msra.mxu0 %v1289
    %1367 = vmatprep.subr.mxu0 %v1286
    %1368 = vmatpush1.msra.mxu0 %v1285
    %1369 = vmatprep.subr.mxu0 %v1282
    %1370 = vmatpush1.msra.mxu0 %v1281
    %1371 = vmatprep.subr.mxu0 %v1278
    %1372 = vmatpush1.msra.mxu0 %v1277
    %1373 = vmatprep.subr.mxu0 0.0
    %1374 = vmatpush2.msra.mxu0 0.0
    %1375 = vmatprep.subr.mxu0 0.0
    %1376 = vmatpush2.msra.mxu0 0.0
    %1377 = vmatprep.subr.mxu0 0.0
    %1378 = vmatpush2.msra.mxu0 0.0
    %1379 = vmatprep.subr.mxu0 0.0
    %1380 = vmatpush2.msra.mxu0 0.0
    %1381 = vmatprep.subr.mxu0 0.0
    %1382 = vmatpush2.msra.mxu0 0.0
    %1383 = vmatprep.subr.mxu0 0.0
    %1384 = vmatpush2.msra.mxu0 0.0
    %1385 = vmatprep.subr.mxu0 0.0
    %1386 = vmatpush2.msra.mxu0 0.0
    %1387 = vmatprep.subr.mxu0 0.0
    %1388 = vmatpush2.msra.mxu0 0.0
    %1389 = vmatprep.subr.mxu0 0.0
    %1390 = vmatpush2.msra.mxu0 0.0
    %1391 = vmatprep.subr.mxu0 0.0
    %1392 = vmatpush2.msra.mxu0 0.0
    %1393 = vmatprep.subr.mxu0 0.0
    %1394 = vmatpush2.msra.mxu0 0.0
    %1395 = vmatprep.subr.mxu0 0.0
    %1396 = vmatpush2.msra.mxu0 0.0
    %1397 = vmatprep.subr.mxu0 0.0
    %1398 = vmatpush2.msra.mxu0 0.0
    %1399 = vmatprep.subr.mxu0 0.0
    %1400 = vmatpush2.msra.mxu0 0.0
    %1401 = vmatprep.subr.mxu0 0.0
    %1402 = vmatpush2.msra.mxu0 0.0
    %1403 = vmatprep.subr.mxu0 0.0
    %1404 = vmatpush2.msra.mxu0 0.0
    %1405 = vmatprep.mubr.f32.mxu0 0.0
    %1406 = vmatmul.mubr.f32.gmra.mxu0 %v1276
    %v1407 = vpop.f32.mrf.mxu0
    %v1408 = vadd.f32 0.0, %v1407
    %v1409 = vpop.f32.mrf.mxu0
    %v1410 = vadd.f32 0.0, %v1409
    %1411 = vdwg.mxu0
    %1412 = vmatprep.subr.mxu0 %v1340
    %1413 = vmatpush1.msra.mxu0 %v1339
    %1414 = vmatprep.subr.mxu0 %v1336
    %1415 = vmatpush1.msra.mxu0 %v1335
    %1416 = vmatprep.subr.mxu0 %v1332
    %1417 = vmatpush1.msra.mxu0 %v1331
    %1418 = vmatprep.subr.mxu0 %v1328
    %1419 = vmatpush1.msra.mxu0 %v1327
    %1420 = vmatprep.subr.mxu0 %v1324
    %1421 = vmatpush1.msra.mxu0 %v1323
    %1422 = vmatprep.subr.mxu0 %v1320
    %1423 = vmatpush1.msra.mxu0 %v1319
    %1424 = vmatprep.subr.mxu0 %v1316
    %1425 = vmatpush1.msra.mxu0 %v1315
    %1426 = vmatprep.subr.mxu0 %v1312
    %1427 = vmatpush1.msra.mxu0 %v1311
    %1428 = vmatprep.subr.mxu0 %v1308
    %1429 = vmatpush1.msra.mxu0 %v1307
    %1430 = vmatprep.subr.mxu0 %v1304
    %1431 = vmatpush1.msra.mxu0 %v1303
    %1432 = vmatprep.subr.mxu0 %v1300
    %1433 = vmatpush1.msra.mxu0 %v1299
    %1434 = vmatprep.subr.mxu0 %v1296
    %1435 = vmatpush1.msra.mxu0 %v1295
    %1436 = vmatprep.subr.mxu0 %v1292
    %1437 = vmatpush1.msra.mxu0 %v1291
    %1438 = vmatprep.subr.mxu0 %v1288
    %1439 = vmatpush1.msra.mxu0 %v1287
    %1440 = vmatprep.subr.mxu0 %v1284
    %1441 = vmatpush1.msra.mxu0 %v1283
    %1442 = vmatprep.subr.mxu0 %v1280
    %1443 = vmatpush1.msra.mxu0 %v1279
    %1444 = vmatprep.subr.mxu0 0.0
    %1445 = vmatpush2.msra.mxu0 0.0
    %1446 = vmatprep.subr.mxu0 0.0
    %1447 = vmatpush2.msra.mxu0 0.0
    %1448 = vmatprep.subr.mxu0 0.0
    %1449 = vmatpush2.msra.mxu0 0.0
    %1450 = vmatprep.subr.mxu0 0.0
    %1451 = vmatpush2.msra.mxu0 0.0
    %1452 = vmatprep.subr.mxu0 0.0
    %1453 = vmatpush2.msra.mxu0 0.0
    %1454 = vmatprep.subr.mxu0 0.0
    %1455 = vmatpush2.msra.mxu0 0.0
    %1456 = vmatprep.subr.mxu0 0.0
    %1457 = vmatpush2.msra.mxu0 0.0
    %1458 = vmatprep.subr.mxu0 0.0
    %1459 = vmatpush2.msra.mxu0 0.0
    %1460 = vmatprep.subr.mxu0 0.0
    %1461 = vmatpush2.msra.mxu0 0.0
    %1462 = vmatprep.subr.mxu0 0.0
    %1463 = vmatpush2.msra.mxu0 0.0
    %1464 = vmatprep.subr.mxu0 0.0
    %1465 = vmatpush2.msra.mxu0 0.0
    %1466 = vmatprep.subr.mxu0 0.0
    %1467 = vmatpush2.msra.mxu0 0.0
    %1468 = vmatprep.subr.mxu0 0.0
    %1469 = vmatpush2.msra.mxu0 0.0
    %1470 = vmatprep.subr.mxu0 0.0
    %1471 = vmatpush2.msra.mxu0 0.0
    %1472 = vmatprep.subr.mxu0 0.0
    %1473 = vmatpush2.msra.mxu0 0.0
    %1474 = vmatprep.subr.mxu0 0.0
    %1475 = vmatpush2.msra.mxu0 0.0
    %1476 = vmatprep.mubr.f32.mxu0 0.0
    %1477 = vmatmul.mubr.f32.gmra.mxu0 %v1276
    %v1478 = vpop.f32.mrf.mxu0
    %v1479 = vadd.f32 0.0, %v1478
    %v1480 = vpop.f32.mrf.mxu0
    %v1481 = vadd.f32 0.0, %v1480
    %1482 = vdwg.mxu0
    %v1483 = vadd.f32 %v1272, %v1408
    %v1484 = vadd.f32 %v1273, %v1410
    %v1485 = vadd.f32 %v1274, %v1479
    %v1486 = vadd.f32 %v1275, %v1481
    %v1487 = vxor.u32 %v1483, 2147483648
    %v1488 = vmul.f32 %v1487, 1.442695
    %v1489 = vpow.pop %v1488
    %v1490 = vadd.f32 %v1489, 1.0
    %v1491 = vrcp.pop %v1490
    %v1492 = vmul.f32 1.0, %v1491
    %v1493 = vxor.u32 %v1484, 2147483648
    %v1494 = vmul.f32 %v1493, 1.442695
    %v1495 = vpow.pop %v1494
    %v1496 = vadd.f32 %v1495, 1.0
    %v1497 = vrcp.pop %v1496
    %v1498 = vmul.f32 1.0, %v1497
    %v1499 = vtanh.pop %v1485
    %v1500 = vxor.u32 %v1486, 2147483648
    %v1501 = vmul.f32 %v1500, 1.442695
    %v1502 = vpow.pop %v1501
    %v1503 = vadd.f32 %v1502, 1.0
    %v1504 = vrcp.pop %v1503
    %v1505 = vmul.f32 1.0, %v1504
    %v1506 = vld [vmem:[#allocation4] sm:$0xff]
    %v1507 = vmul.f32 %v1498, %v1506
    %v1508 = vmul.f32 %v1492, %v1499
    %v1509 = vadd.f32 %v1507, %v1508
    %v1510 = vtanh.pop %v1509
    %v1511 = vmul.f32 %v1505, %v1510
    %1512 = vst [vmem:[#allocation4] sm:$0xff] %v1509
    %1513 = vst [vmem:[#allocation3] sm:$0xff] %v1511
    %s1514 = scalar_lea.vmem [#allocation9], 40
    %1515 = vst [vmem:[%s1514] sm:$0xff] %v1511
    %s1516 = scalar_lea.vmem [#allocation6], 192
    %v1517 = vld [vmem:[%s1516] sm:$0xff]
    %v1518 = vld [vmem:[%s1516 + $0x8] sm:$0xff]
    %v1519 = vld [vmem:[%s1516 + $0x10] sm:$0xff]
    %v1520 = vld [vmem:[%s1516 + $0x18] sm:$0xff]
    %v1521 = vld [vmem:[#allocation3] sm:$0xff]
    %v1522 = vld [vmem:[#allocation2] sm:$0xff]
    %v1523 = vld [vmem:[#allocation2 + $0x8] sm:$0xff]
    %v1524 = vld [vmem:[#allocation2 + $0x10] sm:$0xff]
    %v1525 = vld [vmem:[#allocation2 + $0x18] sm:$0xff]
    %v1526 = vld [vmem:[#allocation2 + $0x20] sm:$0xff]
    %v1527 = vld [vmem:[#allocation2 + $0x28] sm:$0xff]
    %v1528 = vld [vmem:[#allocation2 + $0x30] sm:$0xff]
    %v1529 = vld [vmem:[#allocation2 + $0x38] sm:$0xff]
    %v1530 = vld [vmem:[#allocation2 + $0x40] sm:$0xff]
    %v1531 = vld [vmem:[#allocation2 + $0x48] sm:$0xff]
    %v1532 = vld [vmem:[#allocation2 + $0x50] sm:$0xff]
    %v1533 = vld [vmem:[#allocation2 + $0x58] sm:$0xff]
    %v1534 = vld [vmem:[#allocation2 + $0x60] sm:$0xff]
    %v1535 = vld [vmem:[#allocation2 + $0x68] sm:$0xff]
    %v1536 = vld [vmem:[#allocation2 + $0x70] sm:$0xff]
    %v1537 = vld [vmem:[#allocation2 + $0x78] sm:$0xff]
    %v1538 = vld [vmem:[#allocation2 + $0x80] sm:$0xff]
    %v1539 = vld [vmem:[#allocation2 + $0x88] sm:$0xff]
    %v1540 = vld [vmem:[#allocation2 + $0x90] sm:$0xff]
    %v1541 = vld [vmem:[#allocation2 + $0x98] sm:$0xff]
    %v1542 = vld [vmem:[#allocation2 + $0xa0] sm:$0xff]
    %v1543 = vld [vmem:[#allocation2 + $0xa8] sm:$0xff]
    %v1544 = vld [vmem:[#allocation2 + $0xb0] sm:$0xff]
    %v1545 = vld [vmem:[#allocation2 + $0xb8] sm:$0xff]
    %v1546 = vld [vmem:[#allocation2 + $0xc0] sm:$0xff]
    %v1547 = vld [vmem:[#allocation2 + $0xc8] sm:$0xff]
    %v1548 = vld [vmem:[#allocation2 + $0xd0] sm:$0xff]
    %v1549 = vld [vmem:[#allocation2 + $0xd8] sm:$0xff]
    %v1550 = vld [vmem:[#allocation2 + $0xe0] sm:$0xff]
    %v1551 = vld [vmem:[#allocation2 + $0xe8] sm:$0xff]
    %v1552 = vld [vmem:[#allocation2 + $0xf0] sm:$0xff]
    %v1553 = vld [vmem:[#allocation2 + $0xf8] sm:$0xff]
    %v1554 = vld [vmem:[#allocation2 + $0x100] sm:$0xff]
    %v1555 = vld [vmem:[#allocation2 + $0x108] sm:$0xff]
    %v1556 = vld [vmem:[#allocation2 + $0x110] sm:$0xff]
    %v1557 = vld [vmem:[#allocation2 + $0x118] sm:$0xff]
    %v1558 = vld [vmem:[#allocation2 + $0x120] sm:$0xff]
    %v1559 = vld [vmem:[#allocation2 + $0x128] sm:$0xff]
    %v1560 = vld [vmem:[#allocation2 + $0x130] sm:$0xff]
    %v1561 = vld [vmem:[#allocation2 + $0x138] sm:$0xff]
    %v1562 = vld [vmem:[#allocation2 + $0x140] sm:$0xff]
    %v1563 = vld [vmem:[#allocation2 + $0x148] sm:$0xff]
    %v1564 = vld [vmem:[#allocation2 + $0x150] sm:$0xff]
    %v1565 = vld [vmem:[#allocation2 + $0x158] sm:$0xff]
    %v1566 = vld [vmem:[#allocation2 + $0x160] sm:$0xff]
    %v1567 = vld [vmem:[#allocation2 + $0x168] sm:$0xff]
    %v1568 = vld [vmem:[#allocation2 + $0x170] sm:$0xff]
    %v1569 = vld [vmem:[#allocation2 + $0x178] sm:$0xff]
    %v1570 = vld [vmem:[#allocation2 + $0x180] sm:$0xff]
    %v1571 = vld [vmem:[#allocation2 + $0x188] sm:$0xff]
    %v1572 = vld [vmem:[#allocation2 + $0x190] sm:$0xff]
    %v1573 = vld [vmem:[#allocation2 + $0x198] sm:$0xff]
    %v1574 = vld [vmem:[#allocation2 + $0x1a0] sm:$0xff]
    %v1575 = vld [vmem:[#allocation2 + $0x1a8] sm:$0xff]
    %v1576 = vld [vmem:[#allocation2 + $0x1b0] sm:$0xff]
    %v1577 = vld [vmem:[#allocation2 + $0x1b8] sm:$0xff]
    %v1578 = vld [vmem:[#allocation2 + $0x1c0] sm:$0xff]
    %v1579 = vld [vmem:[#allocation2 + $0x1c8] sm:$0xff]
    %v1580 = vld [vmem:[#allocation2 + $0x1d0] sm:$0xff]
    %v1581 = vld [vmem:[#allocation2 + $0x1d8] sm:$0xff]
    %v1582 = vld [vmem:[#allocation2 + $0x1e0] sm:$0xff]
    %v1583 = vld [vmem:[#allocation2 + $0x1e8] sm:$0xff]
    %v1584 = vld [vmem:[#allocation2 + $0x1f0] sm:$0xff]
    %v1585 = vld [vmem:[#allocation2 + $0x1f8] sm:$0xff]
    %1586 = vmatprep.subr.mxu0 %v1583
    %1587 = vmatpush1.msra.mxu0 %v1582
    %1588 = vmatprep.subr.mxu0 %v1579
    %1589 = vmatpush1.msra.mxu0 %v1578
    %1590 = vmatprep.subr.mxu0 %v1575
    %1591 = vmatpush1.msra.mxu0 %v1574
    %1592 = vmatprep.subr.mxu0 %v1571
    %1593 = vmatpush1.msra.mxu0 %v1570
    %1594 = vmatprep.subr.mxu0 %v1567
    %1595 = vmatpush1.msra.mxu0 %v1566
    %1596 = vmatprep.subr.mxu0 %v1563
    %1597 = vmatpush1.msra.mxu0 %v1562
    %1598 = vmatprep.subr.mxu0 %v1559
    %1599 = vmatpush1.msra.mxu0 %v1558
    %1600 = vmatprep.subr.mxu0 %v1555
    %1601 = vmatpush1.msra.mxu0 %v1554
    %1602 = vmatprep.subr.mxu0 %v1551
    %1603 = vmatpush1.msra.mxu0 %v1550
    %1604 = vmatprep.subr.mxu0 %v1547
    %1605 = vmatpush1.msra.mxu0 %v1546
    %1606 = vmatprep.subr.mxu0 %v1543
    %1607 = vmatpush1.msra.mxu0 %v1542
    %1608 = vmatprep.subr.mxu0 %v1539
    %1609 = vmatpush1.msra.mxu0 %v1538
    %1610 = vmatprep.subr.mxu0 %v1535
    %1611 = vmatpush1.msra.mxu0 %v1534
    %1612 = vmatprep.subr.mxu0 %v1531
    %1613 = vmatpush1.msra.mxu0 %v1530
    %1614 = vmatprep.subr.mxu0 %v1527
    %1615 = vmatpush1.msra.mxu0 %v1526
    %1616 = vmatprep.subr.mxu0 %v1523
    %1617 = vmatpush1.msra.mxu0 %v1522
    %1618 = vmatprep.subr.mxu0 0.0
    %1619 = vmatpush2.msra.mxu0 0.0
    %1620 = vmatprep.subr.mxu0 0.0
    %1621 = vmatpush2.msra.mxu0 0.0
    %1622 = vmatprep.subr.mxu0 0.0
    %1623 = vmatpush2.msra.mxu0 0.0
    %1624 = vmatprep.subr.mxu0 0.0
    %1625 = vmatpush2.msra.mxu0 0.0
    %1626 = vmatprep.subr.mxu0 0.0
    %1627 = vmatpush2.msra.mxu0 0.0
    %1628 = vmatprep.subr.mxu0 0.0
    %1629 = vmatpush2.msra.mxu0 0.0
    %1630 = vmatprep.subr.mxu0 0.0
    %1631 = vmatpush2.msra.mxu0 0.0
    %1632 = vmatprep.subr.mxu0 0.0
    %1633 = vmatpush2.msra.mxu0 0.0
    %1634 = vmatprep.subr.mxu0 0.0
    %1635 = vmatpush2.msra.mxu0 0.0
    %1636 = vmatprep.subr.mxu0 0.0
    %1637 = vmatpush2.msra.mxu0 0.0
    %1638 = vmatprep.subr.mxu0 0.0
    %1639 = vmatpush2.msra.mxu0 0.0
    %1640 = vmatprep.subr.mxu0 0.0
    %1641 = vmatpush2.msra.mxu0 0.0
    %1642 = vmatprep.subr.mxu0 0.0
    %1643 = vmatpush2.msra.mxu0 0.0
    %1644 = vmatprep.subr.mxu0 0.0
    %1645 = vmatpush2.msra.mxu0 0.0
    %1646 = vmatprep.subr.mxu0 0.0
    %1647 = vmatpush2.msra.mxu0 0.0
    %1648 = vmatprep.subr.mxu0 0.0
    %1649 = vmatpush2.msra.mxu0 0.0
    %1650 = vmatprep.mubr.f32.mxu0 0.0
    %1651 = vmatmul.mubr.f32.gmra.mxu0 %v1521
    %v1652 = vpop.f32.mrf.mxu0
    %v1653 = vadd.f32 0.0, %v1652
    %v1654 = vpop.f32.mrf.mxu0
    %v1655 = vadd.f32 0.0, %v1654
    %1656 = vdwg.mxu0
    %1657 = vmatprep.subr.mxu0 %v1585
    %1658 = vmatpush1.msra.mxu0 %v1584
    %1659 = vmatprep.subr.mxu0 %v1581
    %1660 = vmatpush1.msra.mxu0 %v1580
    %1661 = vmatprep.subr.mxu0 %v1577
    %1662 = vmatpush1.msra.mxu0 %v1576
    %1663 = vmatprep.subr.mxu0 %v1573
    %1664 = vmatpush1.msra.mxu0 %v1572
    %1665 = vmatprep.subr.mxu0 %v1569
    %1666 = vmatpush1.msra.mxu0 %v1568
    %1667 = vmatprep.subr.mxu0 %v1565
    %1668 = vmatpush1.msra.mxu0 %v1564
    %1669 = vmatprep.subr.mxu0 %v1561
    %1670 = vmatpush1.msra.mxu0 %v1560
    %1671 = vmatprep.subr.mxu0 %v1557
    %1672 = vmatpush1.msra.mxu0 %v1556
    %1673 = vmatprep.subr.mxu0 %v1553
    %1674 = vmatpush1.msra.mxu0 %v1552
    %1675 = vmatprep.subr.mxu0 %v1549
    %1676 = vmatpush1.msra.mxu0 %v1548
    %1677 = vmatprep.subr.mxu0 %v1545
    %1678 = vmatpush1.msra.mxu0 %v1544
    %1679 = vmatprep.subr.mxu0 %v1541
    %1680 = vmatpush1.msra.mxu0 %v1540
    %1681 = vmatprep.subr.mxu0 %v1537
    %1682 = vmatpush1.msra.mxu0 %v1536
    %1683 = vmatprep.subr.mxu0 %v1533
    %1684 = vmatpush1.msra.mxu0 %v1532
    %1685 = vmatprep.subr.mxu0 %v1529
    %1686 = vmatpush1.msra.mxu0 %v1528
    %1687 = vmatprep.subr.mxu0 %v1525
    %1688 = vmatpush1.msra.mxu0 %v1524
    %1689 = vmatprep.subr.mxu0 0.0
    %1690 = vmatpush2.msra.mxu0 0.0
    %1691 = vmatprep.subr.mxu0 0.0
    %1692 = vmatpush2.msra.mxu0 0.0
    %1693 = vmatprep.subr.mxu0 0.0
    %1694 = vmatpush2.msra.mxu0 0.0
    %1695 = vmatprep.subr.mxu0 0.0
    %1696 = vmatpush2.msra.mxu0 0.0
    %1697 = vmatprep.subr.mxu0 0.0
    %1698 = vmatpush2.msra.mxu0 0.0
    %1699 = vmatprep.subr.mxu0 0.0
    %1700 = vmatpush2.msra.mxu0 0.0
    %1701 = vmatprep.subr.mxu0 0.0
    %1702 = vmatpush2.msra.mxu0 0.0
    %1703 = vmatprep.subr.mxu0 0.0
    %1704 = vmatpush2.msra.mxu0 0.0
    %1705 = vmatprep.subr.mxu0 0.0
    %1706 = vmatpush2.msra.mxu0 0.0
    %1707 = vmatprep.subr.mxu0 0.0
    %1708 = vmatpush2.msra.mxu0 0.0
    %1709 = vmatprep.subr.mxu0 0.0
    %1710 = vmatpush2.msra.mxu0 0.0
    %1711 = vmatprep.subr.mxu0 0.0
    %1712 = vmatpush2.msra.mxu0 0.0
    %1713 = vmatprep.subr.mxu0 0.0
    %1714 = vmatpush2.msra.mxu0 0.0
    %1715 = vmatprep.subr.mxu0 0.0
    %1716 = vmatpush2.msra.mxu0 0.0
    %1717 = vmatprep.subr.mxu0 0.0
    %1718 = vmatpush2.msra.mxu0 0.0
    %1719 = vmatprep.subr.mxu0 0.0
    %1720 = vmatpush2.msra.mxu0 0.0
    %1721 = vmatprep.mubr.f32.mxu0 0.0
    %1722 = vmatmul.mubr.f32.gmra.mxu0 %v1521
    %v1723 = vpop.f32.mrf.mxu0
    %v1724 = vadd.f32 0.0, %v1723
    %v1725 = vpop.f32.mrf.mxu0
    %v1726 = vadd.f32 0.0, %v1725
    %1727 = vdwg.mxu0
    %v1728 = vadd.f32 %v1517, %v1653
    %v1729 = vadd.f32 %v1518, %v1655
    %v1730 = vadd.f32 %v1519, %v1724
    %v1731 = vadd.f32 %v1520, %v1726
    %v1732 = vxor.u32 %v1728, 2147483648
    %v1733 = vmul.f32 %v1732, 1.442695
    %v1734 = vpow.pop %v1733
    %v1735 = vadd.f32 %v1734, 1.0
    %v1736 = vrcp.pop %v1735
    %v1737 = vmul.f32 1.0, %v1736
    %v1738 = vxor.u32 %v1729, 2147483648
    %v1739 = vmul.f32 %v1738, 1.442695
    %v1740 = vpow.pop %v1739
    %v1741 = vadd.f32 %v1740, 1.0
    %v1742 = vrcp.pop %v1741
    %v1743 = vmul.f32 1.0, %v1742
    %v1744 = vtanh.pop %v1730
    %v1745 = vxor.u32 %v1731, 2147483648
    %v1746 = vmul.f32 %v1745, 1.442695
    %v1747 = vpow.pop %v1746
    %v1748 = vadd.f32 %v1747, 1.0
    %v1749 = vrcp.pop %v1748
    %v1750 = vmul.f32 1.0, %v1749
    %v1751 = vld [vmem:[#allocation4] sm:$0xff]
    %v1752 = vmul.f32 %v1743, %v1751
    %v1753 = vmul.f32 %v1737, %v1744
    %v1754 = vadd.f32 %v1752, %v1753
    %v1755 = vtanh.pop %v1754
    %v1756 = vmul.f32 %v1750, %v1755
    %1757 = vst [vmem:[#allocation4] sm:$0xff] %v1754
    %1758 = vst [vmem:[#allocation3] sm:$0xff] %v1756
    %s1759 = scalar_lea.vmem [#allocation9], 48
    %1760 = vst [vmem:[%s1759] sm:$0xff] %v1756
    %s1761 = scalar_lea.vmem [#allocation6], 224
    %v1762 = vld [vmem:[%s1761] sm:$0xff]
    %v1763 = vld [vmem:[%s1761 + $0x8] sm:$0xff]
    %v1764 = vld [vmem:[%s1761 + $0x10] sm:$0xff]
    %v1765 = vld [vmem:[%s1761 + $0x18] sm:$0xff]
    %v1766 = vld [vmem:[#allocation3] sm:$0xff]
    %v1767 = vld [vmem:[#allocation2] sm:$0xff]
    %v1768 = vld [vmem:[#allocation2 + $0x8] sm:$0xff]
    %v1769 = vld [vmem:[#allocation2 + $0x10] sm:$0xff]
    %v1770 = vld [vmem:[#allocation2 + $0x18] sm:$0xff]
    %v1771 = vld [vmem:[#allocation2 + $0x20] sm:$0xff]
    %v1772 = vld [vmem:[#allocation2 + $0x28] sm:$0xff]
    %v1773 = vld [vmem:[#allocation2 + $0x30] sm:$0xff]
    %v1774 = vld [vmem:[#allocation2 + $0x38] sm:$0xff]
    %v1775 = vld [vmem:[#allocation2 + $0x40] sm:$0xff]
    %v1776 = vld [vmem:[#allocation2 + $0x48] sm:$0xff]
    %v1777 = vld [vmem:[#allocation2 + $0x50] sm:$0xff]
    %v1778 = vld [vmem:[#allocation2 + $0x58] sm:$0xff]
    %v1779 = vld [vmem:[#allocation2 + $0x60] sm:$0xff]
    %v1780 = vld [vmem:[#allocation2 + $0x68] sm:$0xff]
    %v1781 = vld [vmem:[#allocation2 + $0x70] sm:$0xff]
    %v1782 = vld [vmem:[#allocation2 + $0x78] sm:$0xff]
    %v1783 = vld [vmem:[#allocation2 + $0x80] sm:$0xff]
    %v1784 = vld [vmem:[#allocation2 + $0x88] sm:$0xff]
    %v1785 = vld [vmem:[#allocation2 + $0x90] sm:$0xff]
    %v1786 = vld [vmem:[#allocation2 + $0x98] sm:$0xff]
    %v1787 = vld [vmem:[#allocation2 + $0xa0] sm:$0xff]
    %v1788 = vld [vmem:[#allocation2 + $0xa8] sm:$0xff]
    %v1789 = vld [vmem:[#allocation2 + $0xb0] sm:$0xff]
    %v1790 = vld [vmem:[#allocation2 + $0xb8] sm:$0xff]
    %v1791 = vld [vmem:[#allocation2 + $0xc0] sm:$0xff]
    %v1792 = vld [vmem:[#allocation2 + $0xc8] sm:$0xff]
    %v1793 = vld [vmem:[#allocation2 + $0xd0] sm:$0xff]
    %v1794 = vld [vmem:[#allocation2 + $0xd8] sm:$0xff]
    %v1795 = vld [vmem:[#allocation2 + $0xe0] sm:$0xff]
    %v1796 = vld [vmem:[#allocation2 + $0xe8] sm:$0xff]
    %v1797 = vld [vmem:[#allocation2 + $0xf0] sm:$0xff]
    %v1798 = vld [vmem:[#allocation2 + $0xf8] sm:$0xff]
    %v1799 = vld [vmem:[#allocation2 + $0x100] sm:$0xff]
    %v1800 = vld [vmem:[#allocation2 + $0x108] sm:$0xff]
    %v1801 = vld [vmem:[#allocation2 + $0x110] sm:$0xff]
    %v1802 = vld [vmem:[#allocation2 + $0x118] sm:$0xff]
    %v1803 = vld [vmem:[#allocation2 + $0x120] sm:$0xff]
    %v1804 = vld [vmem:[#allocation2 + $0x128] sm:$0xff]
    %v1805 = vld [vmem:[#allocation2 + $0x130] sm:$0xff]
    %v1806 = vld [vmem:[#allocation2 + $0x138] sm:$0xff]
    %v1807 = vld [vmem:[#allocation2 + $0x140] sm:$0xff]
    %v1808 = vld [vmem:[#allocation2 + $0x148] sm:$0xff]
    %v1809 = vld [vmem:[#allocation2 + $0x150] sm:$0xff]
    %v1810 = vld [vmem:[#allocation2 + $0x158] sm:$0xff]
    %v1811 = vld [vmem:[#allocation2 + $0x160] sm:$0xff]
    %v1812 = vld [vmem:[#allocation2 + $0x168] sm:$0xff]
    %v1813 = vld [vmem:[#allocation2 + $0x170] sm:$0xff]
    %v1814 = vld [vmem:[#allocation2 + $0x178] sm:$0xff]
    %v1815 = vld [vmem:[#allocation2 + $0x180] sm:$0xff]
    %v1816 = vld [vmem:[#allocation2 + $0x188] sm:$0xff]
    %v1817 = vld [vmem:[#allocation2 + $0x190] sm:$0xff]
    %v1818 = vld [vmem:[#allocation2 + $0x198] sm:$0xff]
    %v1819 = vld [vmem:[#allocation2 + $0x1a0] sm:$0xff]
    %v1820 = vld [vmem:[#allocation2 + $0x1a8] sm:$0xff]
    %v1821 = vld [vmem:[#allocation2 + $0x1b0] sm:$0xff]
    %v1822 = vld [vmem:[#allocation2 + $0x1b8] sm:$0xff]
    %v1823 = vld [vmem:[#allocation2 + $0x1c0] sm:$0xff]
    %v1824 = vld [vmem:[#allocation2 + $0x1c8] sm:$0xff]
    %v1825 = vld [vmem:[#allocation2 + $0x1d0] sm:$0xff]
    %v1826 = vld [vmem:[#allocation2 + $0x1d8] sm:$0xff]
    %v1827 = vld [vmem:[#allocation2 + $0x1e0] sm:$0xff]
    %v1828 = vld [vmem:[#allocation2 + $0x1e8] sm:$0xff]
    %v1829 = vld [vmem:[#allocation2 + $0x1f0] sm:$0xff]
    %v1830 = vld [vmem:[#allocation2 + $0x1f8] sm:$0xff]
    %1831 = vmatprep.subr.mxu0 %v1828
    %1832 = vmatpush1.msra.mxu0 %v1827
    %1833 = vmatprep.subr.mxu0 %v1824
    %1834 = vmatpush1.msra.mxu0 %v1823
    %1835 = vmatprep.subr.mxu0 %v1820
    %1836 = vmatpush1.msra.mxu0 %v1819
    %1837 = vmatprep.subr.mxu0 %v1816
    %1838 = vmatpush1.msra.mxu0 %v1815
    %1839 = vmatprep.subr.mxu0 %v1812
    %1840 = vmatpush1.msra.mxu0 %v1811
    %1841 = vmatprep.subr.mxu0 %v1808
    %1842 = vmatpush1.msra.mxu0 %v1807
    %1843 = vmatprep.subr.mxu0 %v1804
    %1844 = vmatpush1.msra.mxu0 %v1803
    %1845 = vmatprep.subr.mxu0 %v1800
    %1846 = vmatpush1.msra.mxu0 %v1799
    %1847 = vmatprep.subr.mxu0 %v1796
    %1848 = vmatpush1.msra.mxu0 %v1795
    %1849 = vmatprep.subr.mxu0 %v1792
    %1850 = vmatpush1.msra.mxu0 %v1791
    %1851 = vmatprep.subr.mxu0 %v1788
    %1852 = vmatpush1.msra.mxu0 %v1787
    %1853 = vmatprep.subr.mxu0 %v1784
    %1854 = vmatpush1.msra.mxu0 %v1783
    %1855 = vmatprep.subr.mxu0 %v1780
    %1856 = vmatpush1.msra.mxu0 %v1779
    %1857 = vmatprep.subr.mxu0 %v1776
    %1858 = vmatpush1.msra.mxu0 %v1775
    %1859 = vmatprep.subr.mxu0 %v1772
    %1860 = vmatpush1.msra.mxu0 %v1771
    %1861 = vmatprep.subr.mxu0 %v1768
    %1862 = vmatpush1.msra.mxu0 %v1767
    %1863 = vmatprep.subr.mxu0 0.0
    %1864 = vmatpush2.msra.mxu0 0.0
    %1865 = vmatprep.subr.mxu0 0.0
    %1866 = vmatpush2.msra.mxu0 0.0
    %1867 = vmatprep.subr.mxu0 0.0
    %1868 = vmatpush2.msra.mxu0 0.0
    %1869 = vmatprep.subr.mxu0 0.0
    %1870 = vmatpush2.msra.mxu0 0.0
    %1871 = vmatprep.subr.mxu0 0.0
    %1872 = vmatpush2.msra.mxu0 0.0
    %1873 = vmatprep.subr.mxu0 0.0
    %1874 = vmatpush2.msra.mxu0 0.0
    %1875 = vmatprep.subr.mxu0 0.0
    %1876 = vmatpush2.msra.mxu0 0.0
    %1877 = vmatprep.subr.mxu0 0.0
    %1878 = vmatpush2.msra.mxu0 0.0
    %1879 = vmatprep.subr.mxu0 0.0
    %1880 = vmatpush2.msra.mxu0 0.0
    %1881 = vmatprep.subr.mxu0 0.0
    %1882 = vmatpush2.msra.mxu0 0.0
    %1883 = vmatprep.subr.mxu0 0.0
    %1884 = vmatpush2.msra.mxu0 0.0
    %1885 = vmatprep.subr.mxu0 0.0
    %1886 = vmatpush2.msra.mxu0 0.0
    %1887 = vmatprep.subr.mxu0 0.0
    %1888 = vmatpush2.msra.mxu0 0.0
    %1889 = vmatprep.subr.mxu0 0.0
    %1890 = vmatpush2.msra.mxu0 0.0
    %1891 = vmatprep.subr.mxu0 0.0
    %1892 = vmatpush2.msra.mxu0 0.0
    %1893 = vmatprep.subr.mxu0 0.0
    %1894 = vmatpush2.msra.mxu0 0.0
    %1895 = vmatprep.mubr.f32.mxu0 0.0
    %1896 = vmatmul.mubr.f32.gmra.mxu0 %v1766
    %v1897 = vpop.f32.mrf.mxu0
    %v1898 = vadd.f32 0.0, %v1897
    %v1899 = vpop.f32.mrf.mxu0
    %v1900 = vadd.f32 0.0, %v1899
    %1901 = vdwg.mxu0
    %1902 = vmatprep.subr.mxu0 %v1830
    %1903 = vmatpush1.msra.mxu0 %v1829
    %1904 = vmatprep.subr.mxu0 %v1826
    %1905 = vmatpush1.msra.mxu0 %v1825
    %1906 = vmatprep.subr.mxu0 %v1822
    %1907 = vmatpush1.msra.mxu0 %v1821
    %1908 = vmatprep.subr.mxu0 %v1818
    %1909 = vmatpush1.msra.mxu0 %v1817
    %1910 = vmatprep.subr.mxu0 %v1814
    %1911 = vmatpush1.msra.mxu0 %v1813
    %1912 = vmatprep.subr.mxu0 %v1810
    %1913 = vmatpush1.msra.mxu0 %v1809
    %1914 = vmatprep.subr.mxu0 %v1806
    %1915 = vmatpush1.msra.mxu0 %v1805
    %1916 = vmatprep.subr.mxu0 %v1802
    %1917 = vmatpush1.msra.mxu0 %v1801
    %1918 = vmatprep.subr.mxu0 %v1798
    %1919 = vmatpush1.msra.mxu0 %v1797
    %1920 = vmatprep.subr.mxu0 %v1794
    %1921 = vmatpush1.msra.mxu0 %v1793
    %1922 = vmatprep.subr.mxu0 %v1790
    %1923 = vmatpush1.msra.mxu0 %v1789
    %1924 = vmatprep.subr.mxu0 %v1786
    %1925 = vmatpush1.msra.mxu0 %v1785
    %1926 = vmatprep.subr.mxu0 %v1782
    %1927 = vmatpush1.msra.mxu0 %v1781
    %1928 = vmatprep.subr.mxu0 %v1778
    %1929 = vmatpush1.msra.mxu0 %v1777
    %1930 = vmatprep.subr.mxu0 %v1774
    %1931 = vmatpush1.msra.mxu0 %v1773
    %1932 = vmatprep.subr.mxu0 %v1770
    %1933 = vmatpush1.msra.mxu0 %v1769
    %1934 = vmatprep.subr.mxu0 0.0
    %1935 = vmatpush2.msra.mxu0 0.0
    %1936 = vmatprep.subr.mxu0 0.0
    %1937 = vmatpush2.msra.mxu0 0.0
    %1938 = vmatprep.subr.mxu0 0.0
    %1939 = vmatpush2.msra.mxu0 0.0
    %1940 = vmatprep.subr.mxu0 0.0
    %1941 = vmatpush2.msra.mxu0 0.0
    %1942 = vmatprep.subr.mxu0 0.0
    %1943 = vmatpush2.msra.mxu0 0.0
    %1944 = vmatprep.subr.mxu0 0.0
    %1945 = vmatpush2.msra.mxu0 0.0
    %1946 = vmatprep.subr.mxu0 0.0
    %1947 = vmatpush2.msra.mxu0 0.0
    %1948 = vmatprep.subr.mxu0 0.0
    %1949 = vmatpush2.msra.mxu0 0.0
    %1950 = vmatprep.subr.mxu0 0.0
    %1951 = vmatpush2.msra.mxu0 0.0
    %1952 = vmatprep.subr.mxu0 0.0
    %1953 = vmatpush2.msra.mxu0 0.0
    %1954 = vmatprep.subr.mxu0 0.0
    %1955 = vmatpush2.msra.mxu0 0.0
    %1956 = vmatprep.subr.mxu0 0.0
    %1957 = vmatpush2.msra.mxu0 0.0
    %1958 = vmatprep.subr.mxu0 0.0
    %1959 = vmatpush2.msra.mxu0 0.0
    %1960 = vmatprep.subr.mxu0 0.0
    %1961 = vmatpush2.msra.mxu0 0.0
    %1962 = vmatprep.subr.mxu0 0.0
    %1963 = vmatpush2.msra.mxu0 0.0
    %1964 = vmatprep.subr.mxu0 0.0
    %1965 = vmatpush2.msra.mxu0 0.0
    %1966 = vmatprep.mubr.f32.mxu0 0.0
    %1967 = vmatmul.mubr.f32.gmra.mxu0 %v1766
    %v1968 = vpop.f32.mrf.mxu0
    %v1969 = vadd.f32 0.0, %v1968
    %v1970 = vpop.f32.mrf.mxu0
    %v1971 = vadd.f32 0.0, %v1970
    %1972 = vdwg.mxu0
    %v1973 = vadd.f32 %v1762, %v1898
    %v1974 = vadd.f32 %v1763, %v1900
    %v1975 = vadd.f32 %v1764, %v1969
    %v1976 = vadd.f32 %v1765, %v1971
    %v1977 = vxor.u32 %v1973, 2147483648
    %v1978 = vmul.f32 %v1977, 1.442695
    %v1979 = vpow.pop %v1978
    %v1980 = vadd.f32 %v1979, 1.0
    %v1981 = vrcp.pop %v1980
    %v1982 = vmul.f32 1.0, %v1981
    %v1983 = vxor.u32 %v1974, 2147483648
    %v1984 = vmul.f32 %v1983, 1.442695
    %v1985 = vpow.pop %v1984
    %v1986 = vadd.f32 %v1985, 1.0
    %v1987 = vrcp.pop %v1986
    %v1988 = vmul.f32 1.0, %v1987
    %v1989 = vtanh.pop %v1975
    %v1990 = vxor.u32 %v1976, 2147483648
    %v1991 = vmul.f32 %v1990, 1.442695
    %v1992 = vpow.pop %v1991
    %v1993 = vadd.f32 %v1992, 1.0
    %v1994 = vrcp.pop %v1993
    %v1995 = vmul.f32 1.0, %v1994
    %v1996 = vld [vmem:[#allocation4] sm:$0xff]
    %v1997 = vmul.f32 %v1988, %v1996
    %v1998 = vmul.f32 %v1982, %v1989
    %v1999 = vadd.f32 %v1997, %v1998
    %v2000 = vtanh.pop %v1999
    %v2001 = vmul.f32 %v1995, %v2000
    %2002 = vst [vmem:[#allocation4] sm:$0xff] %v1999
    %2003 = vst [vmem:[#allocation3] sm:$0xff] %v2001
    %s2004 = scalar_lea.vmem [#allocation9], 56
    %2005 = vst [vmem:[%s2004] sm:$0xff] %v2001
    // Predicated region
    $region18: #{tpu_custom_call.1} parent=1 // pred_check
      %p2006 = pneg %p27
    $region19: #{tpu_custom_call.1} parent=1 // pred_check_branch
      %2008 = sbr.rel (%p2006) target = $region21
    $region20: #{tpu_custom_call.1} parent=1 // pred_region
      %v2009 = vld [vmem:[#allocation4] sm:$0xff]
      %2010 = vst [vmem:[#allocation10] sm:$0xff] %v2009
    $region21: #{tpu_custom_call.1} parent=1 // pred_fallthru
      _
    // Predicated region
    $region22: #{tpu_custom_call.1} parent=1 // pred_check
      _
    $region23: #{tpu_custom_call.1} parent=1 // pred_check_branch
      %2012 = sbr.rel (0) target = $region25
    $region24: #{tpu_custom_call.1} parent=1 // pred_region
      %s2014 = ssub.s32 1024, 1024
      %2015 = vsyncadd [#allocation8], %s2014
      %s2016 = sshll.u32 [#allocation9], 4
      %s2017 = int_to_ptr.vmem [resolvable:$true] %s2016
      %2022 = dma.vmem_to_hbm [thread:$0]  %s2017, 1024, %s2, [#allocation8], 128, 128, 8
    $region25: #{tpu_custom_call.1} parent=1 // pred_fallthru
      _
    // Predicated region
    $region26: #{tpu_custom_call.1} parent=1 // pred_check
      _
    $region27: #{tpu_custom_call.1} parent=1 // pred_check_branch
      %2024 = sbr.rel (0) target = $region29
    $region28: #{tpu_custom_call.1} parent=1 // pred_region
      %s2026 = ssub.s32 128, 128
      %2027 = vsyncadd [#allocation11], %s2026
      %s2029 = sshll.u32 [#allocation10], 4
      %s2030 = int_to_ptr.vmem [resolvable:$true] %s2029
      %2032 = dma.vmem_to_hbm [thread:$0]  %s2030, 128, %s3, [#allocation11]
    $region29: #{tpu_custom_call.1} parent=1 // pred_fallthru
      _
    // Predicated region
    $region30: #{tpu_custom_call.1} parent=1 // pred_check
      _
    $region31: #{tpu_custom_call.1} parent=1 // pred_check_branch
      %2034 = sbr.rel (0) target = $region33
    $region32: #{tpu_custom_call.1} parent=1 // pred_region
      %2035 = dma.done [#allocation8], 1024
    $region33: #{tpu_custom_call.1} parent=1 // pred_fallthru
      _
    // Predicated region
    $region34: #{tpu_custom_call.1} parent=1 // pred_check
      _
    $region35: #{tpu_custom_call.1} parent=1 // pred_check_branch
      %2037 = sbr.rel (0) target = $region37
    $region36: #{tpu_custom_call.1} parent=1 // pred_region
      %2038 = dma.done [#allocation11], 128
    $region37: #{tpu_custom_call.1} parent=1 // pred_fallthru
      _
    %2039 = vsyncpa [#allocation7], 1
    %2040 = vsyncpa [#allocation8], 1
    %2041 = vsyncpa [#allocation11], 1
  %2042 = vsyncmov [#allocation5]
  %s2043 = vpop.sfrf %2042
  %p2044 = scmp.eq.s32.totalorder %s2043, 0
  %p2045 = pneg %p2044
  %2047 = shalt.err (%p2045)

</llo_original>
